<compile_context>
chip_gen: v7x
topology: tpu7x:2x2x1
jax: 0.10.0
libtpu: 0.0.40
codegen_flags: <defaults>
</compile_context>

<pallas_src>
import math
import functools

import jax
import jax.numpy as jnp
from jax import lax
from jax.experimental import pallas as pl
from jax.experimental.pallas import tpu as pltpu

EPS = 1e-6


def _layernorm(x, alpha, bias):
    # mt_transformer LayerNormalization: mean/std over last dim, torch .std()
    # default is unbiased (n-1), eps added to std (not var), scalar alpha/bias.
    n = x.shape[-1]
    mean = jnp.mean(x, axis=-1, keepdims=True)
    var = jnp.sum((x - mean) ** 2, axis=-1, keepdims=True) * (1.0 / (n - 1))
    inv = pl.reciprocal(jnp.sqrt(var) + EPS, approx=True)    # EUP slot, ~free
    return alpha * (x - mean) * inv + bias


def encoder_kernel(x_ref, mask_ref,
                   wq_ref, bq_ref, wk_ref, bk_ref, wv_ref, bv_ref,
                   wo_ref, bo_ref, w1_ref, b1_ref, w2_ref, b2_ref,
                   ln_ref,
                   out_ref,
                   k_scr, v_scr, cat_scr,
                   *, num_heads, tq):
    t = pl.program_id(1)
    _, S, D = x_ref.shape
    dk = D // num_heads
    scale = jnp.float32(1.0 / math.sqrt(dk))

    ln1_a = ln_ref[0]
    ln1_b = ln_ref[1]
    ln2_a = ln_ref[2]
    ln2_b = ln_ref[3]

    # ---- K / V over the whole sequence: computed once per batch row (first
    # query tile) and cached in persistent VMEM scratch for the other tiles.
    @pl.when(t == 0)
    def _():
        xn_full = _layernorm(x_ref[0], ln1_a, ln1_b)
        k_scr[...] = (jnp.dot(xn_full, wk_ref[...],
                              preferred_element_type=jnp.float32) + bk_ref[0])
        v_scr[...] = (jnp.dot(xn_full, wv_ref[...],
                              preferred_element_type=jnp.float32) + bv_ref[0])

    # ---------- residual connection 0: x + MHA(LayerNorm(x)) -----------------
    q_start = pl.multiple_of(t * tq, tq)
    xq = x_ref[0, pl.ds(q_start, tq), :]                     # (TQ, D)
    xn_q = _layernorm(xq, ln1_a, ln1_b)
    # Fold 1/sqrt(dk) into Q once instead of scaling each head's score matrix.
    q = (jnp.dot(xn_q, wq_ref[...], preferred_element_type=jnp.float32)
         + bq_ref[0]) * scale

    # Mask hoisted out of the head loop as an additive bias.  Identical to
    # masked_fill(mask==0, -1e9) whenever a row has >=1 valid key (masked keys
    # underflow to exactly 0 after softmax); fully-padded query rows are garbage
    # either way and must be masked downstream.
    mbias = jnp.where(mask_ref[0] == 0.0, jnp.float32(-1e9), jnp.float32(0.0))

    k = k_scr[...]                                           # (S, D)
    v = v_scr[...]                                           # (S, D)
    # Short unrolled loop over heads; each head writes its output slab into the
    # concat scratch so Wo is applied with one full-width (K = D) MXU matmul.
    for h in range(num_heads):
        qh = q[:, h * dk:(h + 1) * dk]
        kh = k[:, h * dk:(h + 1) * dk]
        vh = v[:, h * dk:(h + 1) * dk]
        # q @ k^T without materializing a transpose: contract dim 1 of both.
        scores = lax.dot_general(qh, kh, (((1,), (1,)), ((), ())),
                                 preferred_element_type=jnp.float32)
        scores = scores + mbias
        scores = scores - jnp.max(scores, axis=-1, keepdims=True)
        p = jnp.exp(scores)
        p = p * pl.reciprocal(jnp.sum(p, axis=-1, keepdims=True), approx=True)
        cat_scr[:, h * dk:(h + 1) * dk] = jnp.dot(
            p, vh, preferred_element_type=jnp.float32)

    attn = (jnp.dot(cat_scr[...], wo_ref[...],
                    preferred_element_type=jnp.float32) + bo_ref[0])
    x1 = xq + attn                                           # dropout = identity

    # ---------- residual connection 1: x1 + FFN(LayerNorm(x1)) ---------------
    xn2 = _layernorm(x1, ln2_a, ln2_b)
    hid = jnp.maximum(
        jnp.dot(xn2, w1_ref[...], preferred_element_type=jnp.float32)
        + b1_ref[0], 0.0)
    ff = (jnp.dot(hid, w2_ref[...], preferred_element_type=jnp.float32)
          + b2_ref[0])
    out_ref[0] = (x1 + ff).astype(out_ref.dtype)


def _pick_tq(S):
    # Biggest query tile that divides S and respects the (8,128) sublane rule.
    for cand in (512, 256, 128, 64, 32, 16, 8):
        if cand <= S and S % cand == 0:
            return cand
    return S  # fallback: full sequence (block == full dim is always legal)


def encoder_stack_old(x, src_mask, params, num_heads, tq=None):
    B, S, D = x.shape
    d_ff = params["w1"].shape[1]
    assert D % num_heads == 0
    if tq is None:
        tq = _pick_tq(S)
    assert S % tq == 0
    nq = S // tq

    # Pack the four scalar LayerNorm parameters into one SMEM vector.
    ln_params = jnp.stack([
        params["ln1_a"].reshape(()), params["ln1_b"].reshape(()),
        params["ln2_a"].reshape(()), params["ln2_b"].reshape(())])

    def full(shape):
        return pl.BlockSpec(shape, lambda b, t: (0,) * len(shape))

    in_specs = [
        pl.BlockSpec((1, S, D), lambda b, t: (b, 0, 0)),    # x (full seq, resident across t)
        pl.BlockSpec((1, 1, S), lambda b, t: (b, 0, 0)),    # src_mask
        full((D, D)), full((1, D)),                         # wq, bq
        full((D, D)), full((1, D)),                         # wk, bk
        full((D, D)), full((1, D)),                         # wv, bv
        full((D, D)), full((1, D)),                         # wo, bo
        full((D, d_ff)), full((1, d_ff)),                   # w1, b1
        full((d_ff, D)), full((1, D)),                      # w2, b2
        pl.BlockSpec(memory_space=pltpu.MemorySpace.SMEM),  # ln scalars (4,)
    ]

    flops = 2 * B * S * D * (4 * D + 2 * S + 2 * d_ff)
    transcendentals = B * (num_heads * S * S + S * (num_heads + 2))
    bytes_accessed = 4 * (2 * B * S * D + B * S
                          + 4 * D * D + 2 * D * d_ff + 4 * D + d_ff + 4)

    kernel = functools.partial(encoder_kernel, num_heads=num_heads, tq=tq)
    return pl.pallas_call(
        kernel,
        out_shape=jax.ShapeDtypeStruct((B, S, D), x.dtype),
        grid=(B, nq),
        in_specs=in_specs,
        out_specs=pl.BlockSpec((1, tq, D), lambda b, t: (b, t, 0)),
        scratch_shapes=[
            pltpu.VMEM((S, D), jnp.float32),    # K cache (full sequence)
            pltpu.VMEM((S, D), jnp.float32),    # V cache (full sequence)
            pltpu.VMEM((tq, D), jnp.float32),   # concat(head outputs)
        ],
        compiler_params=pltpu.CompilerParams(
            dimension_semantics=("parallel", "arbitrary"),
            vmem_limit_bytes=48 * 1024 * 1024),
        cost_estimate=pl.CostEstimate(
            flops=flops, transcendentals=transcendentals,
            bytes_accessed=bytes_accessed),
    )(x, src_mask,
      params["wq"], params["bq"], params["wk"], params["bk"],
      params["wv"], params["bv"], params["wo"], params["bo"],
      params["w1"], params["b1"], params["w2"], params["b2"],
      ln_params)


def reference(x, src_mask, params, num_heads):
    """Pure-JAX mirror of the PyTorch module (for correctness check)."""
    B, S, D = x.shape
    dk = D // num_heads

    def ln(t, a, b):
        n = t.shape[-1]
        mean = jnp.mean(t, axis=-1, keepdims=True)
        var = jnp.sum((t - mean) ** 2, axis=-1, keepdims=True) / (n - 1)
        return a * (t - mean) / (jnp.sqrt(var) + EPS) + b

    xn = ln(x, params["ln1_a"][0, 0], params["ln1_b"][0, 0])
    q = xn @ params["wq"] + params["bq"][0]
    k = xn @ params["wk"] + params["bk"][0]
    v = xn @ params["wv"] + params["bv"][0]
    q = q.reshape(B, S, num_heads, dk).transpose(0, 2, 1, 3)
    k = k.reshape(B, S, num_heads, dk).transpose(0, 2, 1, 3)
    v = v.reshape(B, S, num_heads, dk).transpose(0, 2, 1, 3)
    scores = jnp.einsum("bhqd,bhkd->bhqk", q, k) / math.sqrt(dk)
    scores = jnp.where(src_mask[:, None, :, :] == 0.0, -1e9, scores)
    p = jax.nn.softmax(scores, axis=-1)
    o = jnp.einsum("bhqk,bhkd->bhqd", p, v).transpose(0, 2, 1, 3).reshape(B, S, D)
    x1 = x + (o @ params["wo"] + params["bo"][0])
    xn2 = ln(x1, params["ln2_a"][0, 0], params["ln2_b"][0, 0])
    ff = jnp.maximum(xn2 @ params["w1"] + params["b1"][0], 0.0) @ params["w2"] + params["b2"][0]
    return x1 + ff


def init_params(key, d_model, d_ff):
    ks = jax.random.split(key, 6)
    s = 0.02
    return {
        "wq": s * jax.random.normal(ks[0], (d_model, d_model), jnp.float32),
        "bq": jnp.zeros((1, d_model), jnp.float32),
        "wk": s * jax.random.normal(ks[1], (d_model, d_model), jnp.float32),
        "bk": jnp.zeros((1, d_model), jnp.float32),
        "wv": s * jax.random.normal(ks[2], (d_model, d_model), jnp.float32),
        "bv": jnp.zeros((1, d_model), jnp.float32),
        "wo": s * jax.random.normal(ks[3], (d_model, d_model), jnp.float32),
        "bo": jnp.zeros((1, d_model), jnp.float32),
        "w1": s * jax.random.normal(ks[4], (d_model, d_ff), jnp.float32),
        "b1": jnp.zeros((1, d_ff), jnp.float32),
        "w2": s * jax.random.normal(ks[5], (d_ff, d_model), jnp.float32),
        "b2": jnp.zeros((1, d_model), jnp.float32),
        "ln1_a": jnp.ones((1, 1), jnp.float32),
        "ln1_b": jnp.zeros((1, 1), jnp.float32),
        "ln2_a": jnp.ones((1, 1), jnp.float32),
        "ln2_b": jnp.zeros((1, 1), jnp.float32),
    }


if __name__ == "__main__":
    # Small shapes; tq=8 with S=16 gives 2 query tiles so the K/V-cache path
    # (pl.when(t == 0) + persistent scratch) and output tiling are exercised.
    B, S, D, H, D_FF = 2, 16, 32, 4, 64
    key = jax.random.PRNGKey(0)
    kx, kp = jax.random.split(key)
    x = jax.random.normal(kx, (B, S, D), jnp.float32)
    # second sequence has 5 padding tokens at the end
    src_mask = jnp.ones((B, 1, S), jnp.float32)
    src_mask = src_mask.at[1, 0, 11:].set(0.0)
    params = init_params(kp, D, D_FF)

    out = encoder_stack_old(x, src_mask, params, num_heads=H, tq=8)
    out = jax.block_until_ready(out)

    ref = reference(x, src_mask, params, num_heads=H)
    assert out.shape == (B, S, D)
    # 2e-3 tolerance: pl.reciprocal(approx=True) is used for softmax/LN recips.
    assert jnp.allclose(out, ref, atol=2e-3, rtol=2e-3), "kernel mismatch vs reference"
    print("KERNEL_OK")
</pallas_src>

<mosaic_0001>
module attributes {stable_mosaic.version = 11 : i64} {
  func.func @encoder_kernel(%arg0: i32, %arg1: i32, %arg2: memref<1x16x32xf32, #tpu.memory_space<vmem>>, %arg3: memref<1x1x16xf32, #tpu.memory_space<vmem>>, %arg4: memref<32x32xf32, #tpu.memory_space<vmem>>, %arg5: memref<1x32xf32, #tpu.memory_space<vmem>>, %arg6: memref<32x32xf32, #tpu.memory_space<vmem>>, %arg7: memref<1x32xf32, #tpu.memory_space<vmem>>, %arg8: memref<32x32xf32, #tpu.memory_space<vmem>>, %arg9: memref<1x32xf32, #tpu.memory_space<vmem>>, %arg10: memref<32x32xf32, #tpu.memory_space<vmem>>, %arg11: memref<1x32xf32, #tpu.memory_space<vmem>>, %arg12: memref<32x64xf32, #tpu.memory_space<vmem>>, %arg13: memref<1x64xf32, #tpu.memory_space<vmem>>, %arg14: memref<64x32xf32, #tpu.memory_space<vmem>>, %arg15: memref<1x32xf32, #tpu.memory_space<vmem>>, %arg16: memref<4xf32, #tpu.memory_space<smem>>, %arg17: memref<1x8x32xf32, #tpu.memory_space<vmem>>, %arg18: memref<16x32xf32, #tpu.memory_space<vmem>>, %arg19: memref<16x32xf32, #tpu.memory_space<vmem>>, %arg20: memref<8x32xf32, #tpu.memory_space<vmem>>) attributes {dimension_semantics = [#tpu.dimension_semantics<parallel>, #tpu.dimension_semantics<arbitrary>], iteration_bounds = array<i64: 2, 2>, scalar_prefetch = 0 : i64, scratch_operands = 3 : i64, tpu.core_type = #tpu.core_type<tc>, window_params = [{transform_indices = @transform_0, window_bounds = array<i64: 1, 16, 32>}, {transform_indices = @transform_1, window_bounds = array<i64: 1, 1, 16>}, {pipeline_mode = #tpu.pipeline_mode<synchronous>, transform_indices = @transform_2, window_bounds = array<i64: 32, 32>}, {pipeline_mode = #tpu.pipeline_mode<synchronous>, transform_indices = @transform_3, window_bounds = array<i64: 1, 32>}, {pipeline_mode = #tpu.pipeline_mode<synchronous>, transform_indices = @transform_4, window_bounds = array<i64: 32, 32>}, {pipeline_mode = #tpu.pipeline_mode<synchronous>, transform_indices = @transform_5, window_bounds = array<i64: 1, 32>}, {pipeline_mode = #tpu.pipeline_mode<synchronous>, transform_indices = @transform_6, window_bounds = array<i64: 32, 32>}, {pipeline_mode = #tpu.pipeline_mode<synchronous>, transform_indices = @transform_7, window_bounds = array<i64: 1, 32>}, {pipeline_mode = #tpu.pipeline_mode<synchronous>, transform_indices = @transform_8, window_bounds = array<i64: 32, 32>}, {pipeline_mode = #tpu.pipeline_mode<synchronous>, transform_indices = @transform_9, window_bounds = array<i64: 1, 32>}, {pipeline_mode = #tpu.pipeline_mode<synchronous>, transform_indices = @transform_10, window_bounds = array<i64: 32, 64>}, {pipeline_mode = #tpu.pipeline_mode<synchronous>, transform_indices = @transform_11, window_bounds = array<i64: 1, 64>}, {pipeline_mode = #tpu.pipeline_mode<synchronous>, transform_indices = @transform_12, window_bounds = array<i64: 64, 32>}, {pipeline_mode = #tpu.pipeline_mode<synchronous>, transform_indices = @transform_13, window_bounds = array<i64: 1, 32>}, {transform_indices = @transform_14, window_bounds = array<i64: 4>}, {transform_indices = @transform_15, window_bounds = array<i64: 1, 8, 32>}]} {
    %c0 = arith.constant 0 : index
    %0 = memref.load %arg16[%c0] : memref<4xf32, #tpu.memory_space<smem>>
    %c1 = arith.constant 1 : index
    %1 = memref.load %arg16[%c1] : memref<4xf32, #tpu.memory_space<smem>>
    %c2 = arith.constant 2 : index
    %2 = memref.load %arg16[%c2] : memref<4xf32, #tpu.memory_space<smem>>
    %c3 = arith.constant 3 : index
    %3 = memref.load %arg16[%c3] : memref<4xf32, #tpu.memory_space<smem>>
    %c0_i32 = arith.constant 0 : i32
    %4 = arith.cmpi eq, %arg1, %c0_i32 : i32
    %5 = arith.extui %4 : i1 to i32
    %c0_i32_0 = arith.constant 0 : i32
    %6 = arith.cmpi ne, %5, %c0_i32_0 : i32
    scf.if %6 {
      %c0_70 = arith.constant 0 : index
      %c0_71 = arith.constant 0 : index
      %c0_72 = arith.constant 0 : index
      %177 = vector.load %arg2[%c0_70, %c0_71, %c0_72] : memref<1x16x32xf32, #tpu.memory_space<vmem>>, vector<1x16x32xf32>
      %178 = vector.shape_cast %177 : vector<1x16x32xf32> to vector<16x32xf32>
      %cst_73 = arith.constant dense<0.000000e+00> : vector<16xf32>
      %179 = vector.multi_reduction <add>, %178, %cst_73 [1] : vector<16x32xf32> to vector<16xf32>
      %180 = vector.shape_cast %179 : vector<16xf32> to vector<16x1xf32>
      %cst_74 = arith.constant 3.200000e+01 : f32
      %181 = vector.broadcast %cst_74 : f32 to vector<16x1xf32>
      %182 = arith.divf %180, %181 : vector<16x1xf32>
      %183 = vector.broadcast %182 : vector<16x1xf32> to vector<16x32xf32>
      %184 = arith.subf %178, %183 : vector<16x32xf32>
      %185 = arith.mulf %184, %184 : vector<16x32xf32>
      %cst_75 = arith.constant dense<0.000000e+00> : vector<16xf32>
      %186 = vector.multi_reduction <add>, %185, %cst_75 [1] : vector<16x32xf32> to vector<16xf32>
      %187 = vector.shape_cast %186 : vector<16xf32> to vector<16x1xf32>
      %cst_76 = arith.constant 0.0322580636 : f32
      %188 = vector.broadcast %cst_76 : f32 to vector<16x1xf32>
      %189 = arith.mulf %187, %188 : vector<16x1xf32>
      %190 = math.sqrt %189 : vector<16x1xf32>
      %cst_77 = arith.constant 9.99999997E-7 : f32
      %191 = vector.broadcast %cst_77 : f32 to vector<16x1xf32>
      %192 = arith.addf %190, %191 : vector<16x1xf32>
      %193 = tpu.reciprocal %192 {approx = true} : vector<16x1xf32> -> vector<16x1xf32>
      %194 = vector.broadcast %182 : vector<16x1xf32> to vector<16x32xf32>
      %195 = arith.subf %178, %194 : vector<16x32xf32>
      %196 = vector.broadcast %0 : f32 to vector<16x32xf32>
      %197 = arith.mulf %196, %195 : vector<16x32xf32>
      %198 = vector.broadcast %193 : vector<16x1xf32> to vector<16x32xf32>
      %199 = arith.mulf %197, %198 : vector<16x32xf32>
      %200 = vector.broadcast %1 : f32 to vector<16x32xf32>
      %201 = arith.addf %199, %200 : vector<16x32xf32>
      %c0_78 = arith.constant 0 : index
      %c0_79 = arith.constant 0 : index
      %202 = vector.load %arg6[%c0_78, %c0_79] : memref<32x32xf32, #tpu.memory_space<vmem>>, vector<32x32xf32>
      %cst_80 = arith.constant dense<0.000000e+00> : vector<16x32xf32>
      %203 = tpu.matmul %201, %202, %cst_80 {dimension_numbers = #tpu.dot_dimension_numbers<[1], [0], [0], [1], [0, 0, 1, 1], [], []>} : vector<16x32xf32>, vector<32x32xf32>, vector<16x32xf32> -> vector<16x32xf32>
      %c0_81 = arith.constant 0 : index
      %c0_82 = arith.constant 0 : index
      %204 = vector.load %arg7[%c0_81, %c0_82] : memref<1x32xf32, #tpu.memory_space<vmem>>, vector<1x32xf32>
      %205 = vector.shape_cast %204 : vector<1x32xf32> to vector<32xf32>
      %206 = vector.shape_cast %205 : vector<32xf32> to vector<1x32xf32>
      %207 = vector.broadcast %206 : vector<1x32xf32> to vector<16x32xf32>
      %208 = arith.addf %203, %207 : vector<16x32xf32>
      %c0_83 = arith.constant 0 : index
      %c0_84 = arith.constant 0 : index
      %209 = vector.load %arg18[%c0_83, %c0_84] : memref<16x32xf32, #tpu.memory_space<vmem>>, vector<16x32xf32>
      tpu.vector_store %arg18[%c0_83, %c0_84], %208 {strides = array<i32>} : memref<16x32xf32, #tpu.memory_space<vmem>>, vector<16x32xf32>,
      %c0_85 = arith.constant 0 : index
      %c0_86 = arith.constant 0 : index
      %210 = vector.load %arg8[%c0_85, %c0_86] : memref<32x32xf32, #tpu.memory_space<vmem>>, vector<32x32xf32>
      %cst_87 = arith.constant dense<0.000000e+00> : vector<16x32xf32>
      %211 = tpu.matmul %201, %210, %cst_87 {dimension_numbers = #tpu.dot_dimension_numbers<[1], [0], [0], [1], [0, 0, 1, 1], [], []>} : vector<16x32xf32>, vector<32x32xf32>, vector<16x32xf32> -> vector<16x32xf32>
      %c0_88 = arith.constant 0 : index
      %c0_89 = arith.constant 0 : index
      %212 = vector.load %arg9[%c0_88, %c0_89] : memref<1x32xf32, #tpu.memory_space<vmem>>, vector<1x32xf32>
      %213 = vector.shape_cast %212 : vector<1x32xf32> to vector<32xf32>
      %214 = vector.shape_cast %213 : vector<32xf32> to vector<1x32xf32>
      %215 = vector.broadcast %214 : vector<1x32xf32> to vector<16x32xf32>
      %216 = arith.addf %211, %215 : vector<16x32xf32>
      %c0_90 = arith.constant 0 : index
      %c0_91 = arith.constant 0 : index
      %217 = vector.load %arg19[%c0_90, %c0_91] : memref<16x32xf32, #tpu.memory_space<vmem>>, vector<16x32xf32>
      tpu.vector_store %arg19[%c0_90, %c0_91], %216 {strides = array<i32>} : memref<16x32xf32, #tpu.memory_space<vmem>>, vector<16x32xf32>,
    } else {
    }
    %c8_i32 = arith.constant 8 : i32
    %7 = arith.muli %arg1, %c8_i32 : i32
    %8 = tpu.assume_multiple %7, 8 : i32
    %c0_1 = arith.constant 0 : index
    %9 = arith.index_cast %8 : i32 to index
    %c0_2 = arith.constant 0 : index
    %10 = vector.load %arg2[%c0_1, %9, %c0_2] : memref<1x16x32xf32, #tpu.memory_space<vmem>>, vector<1x8x32xf32>
    %11 = vector.shape_cast %10 : vector<1x8x32xf32> to vector<8x32xf32>
    %cst = arith.constant dense<0.000000e+00> : vector<8xf32>
    %12 = vector.multi_reduction <add>, %11, %cst [1] : vector<8x32xf32> to vector<8xf32>
    %13 = vector.shape_cast %12 : vector<8xf32> to vector<8x1xf32>
    %cst_3 = arith.constant 3.200000e+01 : f32
    %14 = vector.broadcast %cst_3 : f32 to vector<8x1xf32>
    %15 = arith.divf %13, %14 : vector<8x1xf32>
    %16 = vector.broadcast %15 : vector<8x1xf32> to vector<8x32xf32>
    %17 = arith.subf %11, %16 : vector<8x32xf32>
    %18 = arith.mulf %17, %17 : vector<8x32xf32>
    %cst_4 = arith.constant dense<0.000000e+00> : vector<8xf32>
    %19 = vector.multi_reduction <add>, %18, %cst_4 [1] : vector<8x32xf32> to vector<8xf32>
    %20 = vector.shape_cast %19 : vector<8xf32> to vector<8x1xf32>
    %cst_5 = arith.constant 0.0322580636 : f32
    %21 = vector.broadcast %cst_5 : f32 to vector<8x1xf32>
    %22 = arith.mulf %20, %21 : vector<8x1xf32>
    %23 = math.sqrt %22 : vector<8x1xf32>
    %cst_6 = arith.constant 9.99999997E-7 : f32
    %24 = vector.broadcast %cst_6 : f32 to vector<8x1xf32>
    %25 = arith.addf %23, %24 : vector<8x1xf32>
    %26 = tpu.reciprocal %25 {approx = true} : vector<8x1xf32> -> vector<8x1xf32>
    %27 = vector.broadcast %15 : vector<8x1xf32> to vector<8x32xf32>
    %28 = arith.subf %11, %27 : vector<8x32xf32>
    %29 = vector.broadcast %0 : f32 to vector<8x32xf32>
    %30 = arith.mulf %29, %28 : vector<8x32xf32>
    %31 = vector.broadcast %26 : vector<8x1xf32> to vector<8x32xf32>
    %32 = arith.mulf %30, %31 : vector<8x32xf32>
    %33 = vector.broadcast %1 : f32 to vector<8x32xf32>
    %34 = arith.addf %32, %33 : vector<8x32xf32>
    %c0_7 = arith.constant 0 : index
    %c0_8 = arith.constant 0 : index
    %35 = vector.load %arg4[%c0_7, %c0_8] : memref<32x32xf32, #tpu.memory_space<vmem>>, vector<32x32xf32>
    %cst_9 = arith.constant dense<0.000000e+00> : vector<8x32xf32>
    %36 = tpu.matmul %34, %35, %cst_9 {dimension_numbers = #tpu.dot_dimension_numbers<[1], [0], [0], [1], [0, 0, 1, 1], [], []>} : vector<8x32xf32>, vector<32x32xf32>, vector<8x32xf32> -> vector<8x32xf32>
    %c0_10 = arith.constant 0 : index
    %c0_11 = arith.constant 0 : index
    %37 = vector.load %arg5[%c0_10, %c0_11] : memref<1x32xf32, #tpu.memory_space<vmem>>, vector<1x32xf32>
    %38 = vector.shape_cast %37 : vector<1x32xf32> to vector<32xf32>
    %39 = vector.shape_cast %38 : vector<32xf32> to vector<1x32xf32>
    %40 = vector.broadcast %39 : vector<1x32xf32> to vector<8x32xf32>
    %41 = arith.addf %36, %40 : vector<8x32xf32>
    %cst_12 = arith.constant 0.353553385 : f32
    %42 = vector.broadcast %cst_12 : f32 to vector<8x32xf32>
    %43 = arith.mulf %41, %42 : vector<8x32xf32>
    %c0_13 = arith.constant 0 : index
    %c0_14 = arith.constant 0 : index
    %c0_15 = arith.constant 0 : index
    %44 = vector.load %arg3[%c0_13, %c0_14, %c0_15] : memref<1x1x16xf32, #tpu.memory_space<vmem>>, vector<1x1x16xf32>
    %45 = vector.shape_cast %44 : vector<1x1x16xf32> to vector<1x16xf32>
    %cst_16 = arith.constant 0.000000e+00 : f32
    %46 = vector.broadcast %cst_16 : f32 to vector<1x16xf32>
    %47 = arith.cmpf oeq, %45, %46 : vector<1x16xf32>
    %cst_17 = arith.constant -1.000000e+09 : f32
    %cst_18 = arith.constant 0.000000e+00 : f32
    %48 = vector.broadcast %cst_17 : f32 to vector<1x16xf32>
    %49 = vector.broadcast %cst_18 : f32 to vector<1x16xf32>
    %50 = arith.select %47, %48, %49 : vector<1x16xi1>, vector<1x16xf32>
    %c0_19 = arith.constant 0 : index
    %c0_20 = arith.constant 0 : index
    %51 = vector.load %arg18[%c0_19, %c0_20] : memref<16x32xf32, #tpu.memory_space<vmem>>, vector<16x32xf32>
    %c0_21 = arith.constant 0 : index
    %c0_22 = arith.constant 0 : index
    %52 = vector.load %arg19[%c0_21, %c0_22] : memref<16x32xf32, #tpu.memory_space<vmem>>, vector<16x32xf32>
    %53 = vector.extract_strided_slice %43 {offsets = [0, 0], sizes = [8, 8], strides = [1, 1]} : vector<8x32xf32> to vector<8x8xf32>
    %54 = vector.extract_strided_slice %51 {offsets = [0, 0], sizes = [16, 8], strides = [1, 1]} : vector<16x32xf32> to vector<16x8xf32>
    %55 = vector.extract_strided_slice %52 {offsets = [0, 0], sizes = [16, 8], strides = [1, 1]} : vector<16x32xf32> to vector<16x8xf32>
    %cst_23 = arith.constant dense<0.000000e+00> : vector<8x16xf32>
    %56 = tpu.matmul %53, %54, %cst_23 {dimension_numbers = #tpu.dot_dimension_numbers<[1], [1], [0], [0], [0, 0, 1, 0], [], []>} : vector<8x8xf32>, vector<16x8xf32>, vector<8x16xf32> -> vector<8x16xf32>
    %57 = vector.broadcast %50 : vector<1x16xf32> to vector<8x16xf32>
    %58 = arith.addf %56, %57 : vector<8x16xf32>
    %cst_24 = arith.constant dense<0xFF800000> : vector<8xf32>
    %59 = vector.multi_reduction <maximumf>, %58, %cst_24 [1] : vector<8x16xf32> to vector<8xf32>
    %60 = vector.shape_cast %59 : vector<8xf32> to vector<8x1xf32>
    %61 = vector.broadcast %60 : vector<8x1xf32> to vector<8x16xf32>
    %62 = arith.subf %58, %61 : vector<8x16xf32>
    %63 = math.exp %62 : vector<8x16xf32>
    %cst_25 = arith.constant dense<0.000000e+00> : vector<8xf32>
    %64 = vector.multi_reduction <add>, %63, %cst_25 [1] : vector<8x16xf32> to vector<8xf32>
    %65 = vector.shape_cast %64 : vector<8xf32> to vector<8x1xf32>
    %66 = tpu.reciprocal %65 {approx = true} : vector<8x1xf32> -> vector<8x1xf32>
    %67 = vector.broadcast %66 : vector<8x1xf32> to vector<8x16xf32>
    %68 = arith.mulf %63, %67 : vector<8x16xf32>
    %cst_26 = arith.constant dense<0.000000e+00> : vector<8x8xf32>
    %69 = tpu.matmul %68, %55, %cst_26 {dimension_numbers = #tpu.dot_dimension_numbers<[1], [0], [0], [1], [0, 0, 1, 1], [], []>} : vector<8x16xf32>, vector<16x8xf32>, vector<8x8xf32> -> vector<8x8xf32>
    %c0_27 = arith.constant 0 : index
    %c0_28 = arith.constant 0 : index
    %70 = vector.load %arg20[%c0_27, %c0_28] : memref<8x32xf32, #tpu.memory_space<vmem>>, vector<8x8xf32>
    tpu.vector_store %arg20[%c0_27, %c0_28], %69 {strides = array<i32>} : memref<8x32xf32, #tpu.memory_space<vmem>>, vector<8x8xf32>,
    %71 = vector.extract_strided_slice %43 {offsets = [0, 8], sizes = [8, 8], strides = [1, 1]} : vector<8x32xf32> to vector<8x8xf32>
    %72 = vector.extract_strided_slice %51 {offsets = [0, 8], sizes = [16, 8], strides = [1, 1]} : vector<16x32xf32> to vector<16x8xf32>
    %73 = vector.extract_strided_slice %52 {offsets = [0, 8], sizes = [16, 8], strides = [1, 1]} : vector<16x32xf32> to vector<16x8xf32>
    %cst_29 = arith.constant dense<0.000000e+00> : vector<8x16xf32>
    %74 = tpu.matmul %71, %72, %cst_29 {dimension_numbers = #tpu.dot_dimension_numbers<[1], [1], [0], [0], [0, 0, 1, 0], [], []>} : vector<8x8xf32>, vector<16x8xf32>, vector<8x16xf32> -> vector<8x16xf32>
    %75 = vector.broadcast %50 : vector<1x16xf32> to vector<8x16xf32>
    %76 = arith.addf %74, %75 : vector<8x16xf32>
    %cst_30 = arith.constant dense<0xFF800000> : vector<8xf32>
    %77 = vector.multi_reduction <maximumf>, %76, %cst_30 [1] : vector<8x16xf32> to vector<8xf32>
    %78 = vector.shape_cast %77 : vector<8xf32> to vector<8x1xf32>
    %79 = vector.broadcast %78 : vector<8x1xf32> to vector<8x16xf32>
    %80 = arith.subf %76, %79 : vector<8x16xf32>
    %81 = math.exp %80 : vector<8x16xf32>
    %cst_31 = arith.constant dense<0.000000e+00> : vector<8xf32>
    %82 = vector.multi_reduction <add>, %81, %cst_31 [1] : vector<8x16xf32> to vector<8xf32>
    %83 = vector.shape_cast %82 : vector<8xf32> to vector<8x1xf32>
    %84 = tpu.reciprocal %83 {approx = true} : vector<8x1xf32> -> vector<8x1xf32>
    %85 = vector.broadcast %84 : vector<8x1xf32> to vector<8x16xf32>
    %86 = arith.mulf %81, %85 : vector<8x16xf32>
    %cst_32 = arith.constant dense<0.000000e+00> : vector<8x8xf32>
    %87 = tpu.matmul %86, %73, %cst_32 {dimension_numbers = #tpu.dot_dimension_numbers<[1], [0], [0], [1], [0, 0, 1, 1], [], []>} : vector<8x16xf32>, vector<16x8xf32>, vector<8x8xf32> -> vector<8x8xf32>
    %c0_33 = arith.constant 0 : index
    %c8 = arith.constant 8 : index
    %88 = vector.load %arg20[%c0_33, %c8] : memref<8x32xf32, #tpu.memory_space<vmem>>, vector<8x8xf32>
    tpu.vector_store %arg20[%c0_33, %c8], %87 {strides = array<i32>} : memref<8x32xf32, #tpu.memory_space<vmem>>, vector<8x8xf32>,
    %89 = vector.extract_strided_slice %43 {offsets = [0, 16], sizes = [8, 8], strides = [1, 1]} : vector<8x32xf32> to vector<8x8xf32>
    %90 = vector.extract_strided_slice %51 {offsets = [0, 16], sizes = [16, 8], strides = [1, 1]} : vector<16x32xf32> to vector<16x8xf32>
    %91 = vector.extract_strided_slice %52 {offsets = [0, 16], sizes = [16, 8], strides = [1, 1]} : vector<16x32xf32> to vector<16x8xf32>
    %cst_34 = arith.constant dense<0.000000e+00> : vector<8x16xf32>
    %92 = tpu.matmul %89, %90, %cst_34 {dimension_numbers = #tpu.dot_dimension_numbers<[1], [1], [0], [0], [0, 0, 1, 0], [], []>} : vector<8x8xf32>, vector<16x8xf32>, vector<8x16xf32> -> vector<8x16xf32>
    %93 = vector.broadcast %50 : vector<1x16xf32> to vector<8x16xf32>
    %94 = arith.addf %92, %93 : vector<8x16xf32>
    %cst_35 = arith.constant dense<0xFF800000> : vector<8xf32>
    %95 = vector.multi_reduction <maximumf>, %94, %cst_35 [1] : vector<8x16xf32> to vector<8xf32>
    %96 = vector.shape_cast %95 : vector<8xf32> to vector<8x1xf32>
    %97 = vector.broadcast %96 : vector<8x1xf32> to vector<8x16xf32>
    %98 = arith.subf %94, %97 : vector<8x16xf32>
    %99 = math.exp %98 : vector<8x16xf32>
    %cst_36 = arith.constant dense<0.000000e+00> : vector<8xf32>
    %100 = vector.multi_reduction <add>, %99, %cst_36 [1] : vector<8x16xf32> to vector<8xf32>
    %101 = vector.shape_cast %100 : vector<8xf32> to vector<8x1xf32>
    %102 = tpu.reciprocal %101 {approx = true} : vector<8x1xf32> -> vector<8x1xf32>
    %103 = vector.broadcast %102 : vector<8x1xf32> to vector<8x16xf32>
    %104 = arith.mulf %99, %103 : vector<8x16xf32>
    %cst_37 = arith.constant dense<0.000000e+00> : vector<8x8xf32>
    %105 = tpu.matmul %104, %91, %cst_37 {dimension_numbers = #tpu.dot_dimension_numbers<[1], [0], [0], [1], [0, 0, 1, 1], [], []>} : vector<8x16xf32>, vector<16x8xf32>, vector<8x8xf32> -> vector<8x8xf32>
    %c0_38 = arith.constant 0 : index
    %c16 = arith.constant 16 : index
    %106 = vector.load %arg20[%c0_38, %c16] : memref<8x32xf32, #tpu.memory_space<vmem>>, vector<8x8xf32>
    tpu.vector_store %arg20[%c0_38, %c16], %105 {strides = array<i32>} : memref<8x32xf32, #tpu.memory_space<vmem>>, vector<8x8xf32>,
    %107 = vector.extract_strided_slice %43 {offsets = [0, 24], sizes = [8, 8], strides = [1, 1]} : vector<8x32xf32> to vector<8x8xf32>
    %108 = vector.extract_strided_slice %51 {offsets = [0, 24], sizes = [16, 8], strides = [1, 1]} : vector<16x32xf32> to vector<16x8xf32>
    %109 = vector.extract_strided_slice %52 {offsets = [0, 24], sizes = [16, 8], strides = [1, 1]} : vector<16x32xf32> to vector<16x8xf32>
    %cst_39 = arith.constant dense<0.000000e+00> : vector<8x16xf32>
    %110 = tpu.matmul %107, %108, %cst_39 {dimension_numbers = #tpu.dot_dimension_numbers<[1], [1], [0], [0], [0, 0, 1, 0], [], []>} : vector<8x8xf32>, vector<16x8xf32>, vector<8x16xf32> -> vector<8x16xf32>
    %111 = vector.broadcast %50 : vector<1x16xf32> to vector<8x16xf32>
    %112 = arith.addf %110, %111 : vector<8x16xf32>
    %cst_40 = arith.constant dense<0xFF800000> : vector<8xf32>
    %113 = vector.multi_reduction <maximumf>, %112, %cst_40 [1] : vector<8x16xf32> to vector<8xf32>
    %114 = vector.shape_cast %113 : vector<8xf32> to vector<8x1xf32>
    %115 = vector.broadcast %114 : vector<8x1xf32> to vector<8x16xf32>
    %116 = arith.subf %112, %115 : vector<8x16xf32>
    %117 = math.exp %116 : vector<8x16xf32>
    %cst_41 = arith.constant dense<0.000000e+00> : vector<8xf32>
    %118 = vector.multi_reduction <add>, %117, %cst_41 [1] : vector<8x16xf32> to vector<8xf32>
    %119 = vector.shape_cast %118 : vector<8xf32> to vector<8x1xf32>
    %120 = tpu.reciprocal %119 {approx = true} : vector<8x1xf32> -> vector<8x1xf32>
    %121 = vector.broadcast %120 : vector<8x1xf32> to vector<8x16xf32>
    %122 = arith.mulf %117, %121 : vector<8x16xf32>
    %cst_42 = arith.constant dense<0.000000e+00> : vector<8x8xf32>
    %123 = tpu.matmul %122, %109, %cst_42 {dimension_numbers = #tpu.dot_dimension_numbers<[1], [0], [0], [1], [0, 0, 1, 1], [], []>} : vector<8x16xf32>, vector<16x8xf32>, vector<8x8xf32> -> vector<8x8xf32>
    %c0_43 = arith.constant 0 : index
    %c24 = arith.constant 24 : index
    %124 = vector.load %arg20[%c0_43, %c24] : memref<8x32xf32, #tpu.memory_space<vmem>>, vector<8x8xf32>
    tpu.vector_store %arg20[%c0_43, %c24], %123 {strides = array<i32>} : memref<8x32xf32, #tpu.memory_space<vmem>>, vector<8x8xf32>,
    %c0_44 = arith.constant 0 : index
    %c0_45 = arith.constant 0 : index
    %125 = vector.load %arg20[%c0_44, %c0_45] : memref<8x32xf32, #tpu.memory_space<vmem>>, vector<8x32xf32>
    %c0_46 = arith.constant 0 : index
    %c0_47 = arith.constant 0 : index
    %126 = vector.load %arg10[%c0_46, %c0_47] : memref<32x32xf32, #tpu.memory_space<vmem>>, vector<32x32xf32>
    %cst_48 = arith.constant dense<0.000000e+00> : vector<8x32xf32>
    %127 = tpu.matmul %125, %126, %cst_48 {dimension_numbers = #tpu.dot_dimension_numbers<[1], [0], [0], [1], [0, 0, 1, 1], [], []>} : vector<8x32xf32>, vector<32x32xf32>, vector<8x32xf32> -> vector<8x32xf32>
    %c0_49 = arith.constant 0 : index
    %c0_50 = arith.constant 0 : index
    %128 = vector.load %arg11[%c0_49, %c0_50] : memref<1x32xf32, #tpu.memory_space<vmem>>, vector<1x32xf32>
    %129 = vector.shape_cast %128 : vector<1x32xf32> to vector<32xf32>
    %130 = vector.shape_cast %129 : vector<32xf32> to vector<1x32xf32>
    %131 = vector.broadcast %130 : vector<1x32xf32> to vector<8x32xf32>
    %132 = arith.addf %127, %131 : vector<8x32xf32>
    %133 = arith.addf %11, %132 : vector<8x32xf32>
    %cst_51 = arith.constant dense<0.000000e+00> : vector<8xf32>
    %134 = vector.multi_reduction <add>, %133, %cst_51 [1] : vector<8x32xf32> to vector<8xf32>
    %135 = vector.shape_cast %134 : vector<8xf32> to vector<8x1xf32>
    %cst_52 = arith.constant 3.200000e+01 : f32
    %136 = vector.broadcast %cst_52 : f32 to vector<8x1xf32>
    %137 = arith.divf %135, %136 : vector<8x1xf32>
    %138 = vector.broadcast %137 : vector<8x1xf32> to vector<8x32xf32>
    %139 = arith.subf %133, %138 : vector<8x32xf32>
    %140 = arith.mulf %139, %139 : vector<8x32xf32>
    %cst_53 = arith.constant dense<0.000000e+00> : vector<8xf32>
    %141 = vector.multi_reduction <add>, %140, %cst_53 [1] : vector<8x32xf32> to vector<8xf32>
    %142 = vector.shape_cast %141 : vector<8xf32> to vector<8x1xf32>
    %cst_54 = arith.constant 0.0322580636 : f32
    %143 = vector.broadcast %cst_54 : f32 to vector<8x1xf32>
    %144 = arith.mulf %142, %143 : vector<8x1xf32>
    %145 = math.sqrt %144 : vector<8x1xf32>
    %cst_55 = arith.constant 9.99999997E-7 : f32
    %146 = vector.broadcast %cst_55 : f32 to vector<8x1xf32>
    %147 = arith.addf %145, %146 : vector<8x1xf32>
    %148 = tpu.reciprocal %147 {approx = true} : vector<8x1xf32> -> vector<8x1xf32>
    %149 = vector.broadcast %137 : vector<8x1xf32> to vector<8x32xf32>
    %150 = arith.subf %133, %149 : vector<8x32xf32>
    %151 = vector.broadcast %2 : f32 to vector<8x32xf32>
    %152 = arith.mulf %151, %150 : vector<8x32xf32>
    %153 = vector.broadcast %148 : vector<8x1xf32> to vector<8x32xf32>
    %154 = arith.mulf %152, %153 : vector<8x32xf32>
    %155 = vector.broadcast %3 : f32 to vector<8x32xf32>
    %156 = arith.addf %154, %155 : vector<8x32xf32>
    %c0_56 = arith.constant 0 : index
    %c0_57 = arith.constant 0 : index
    %157 = vector.load %arg12[%c0_56, %c0_57] : memref<32x64xf32, #tpu.memory_space<vmem>>, vector<32x64xf32>
    %cst_58 = arith.constant dense<0.000000e+00> : vector<8x64xf32>
    %158 = tpu.matmul %156, %157, %cst_58 {dimension_numbers = #tpu.dot_dimension_numbers<[1], [0], [0], [1], [0, 0, 1, 1], [], []>} : vector<8x32xf32>, vector<32x64xf32>, vector<8x64xf32> -> vector<8x64xf32>
    %c0_59 = arith.constant 0 : index
    %c0_60 = arith.constant 0 : index
    %159 = vector.load %arg13[%c0_59, %c0_60] : memref<1x64xf32, #tpu.memory_space<vmem>>, vector<1x64xf32>
    %160 = vector.shape_cast %159 : vector<1x64xf32> to vector<64xf32>
    %161 = vector.shape_cast %160 : vector<64xf32> to vector<1x64xf32>
    %162 = vector.broadcast %161 : vector<1x64xf32> to vector<8x64xf32>
    %163 = arith.addf %158, %162 : vector<8x64xf32>
    %cst_61 = arith.constant 0.000000e+00 : f32
    %164 = vector.broadcast %cst_61 : f32 to vector<8x64xf32>
    %165 = arith.maximumf %163, %164 : vector<8x64xf32>
    %c0_62 = arith.constant 0 : index
    %c0_63 = arith.constant 0 : index
    %166 = vector.load %arg14[%c0_62, %c0_63] : memref<64x32xf32, #tpu.memory_space<vmem>>, vector<64x32xf32>
    %cst_64 = arith.constant dense<0.000000e+00> : vector<8x32xf32>
    %167 = tpu.matmul %165, %166, %cst_64 {dimension_numbers = #tpu.dot_dimension_numbers<[1], [0], [0], [1], [0, 0, 1, 1], [], []>} : vector<8x64xf32>, vector<64x32xf32>, vector<8x32xf32> -> vector<8x32xf32>
    %c0_65 = arith.constant 0 : index
    %c0_66 = arith.constant 0 : index
    %168 = vector.load %arg15[%c0_65, %c0_66] : memref<1x32xf32, #tpu.memory_space<vmem>>, vector<1x32xf32>
    %169 = vector.shape_cast %168 : vector<1x32xf32> to vector<32xf32>
    %170 = vector.shape_cast %169 : vector<32xf32> to vector<1x32xf32>
    %171 = vector.broadcast %170 : vector<1x32xf32> to vector<8x32xf32>
    %172 = arith.addf %167, %171 : vector<8x32xf32>
    %173 = arith.addf %133, %172 : vector<8x32xf32>
    %c0_67 = arith.constant 0 : index
    %c0_68 = arith.constant 0 : index
    %c0_69 = arith.constant 0 : index
    %174 = vector.load %arg17[%c0_67, %c0_68, %c0_69] : memref<1x8x32xf32, #tpu.memory_space<vmem>>, vector<1x8x32xf32>
    %175 = vector.shape_cast %174 : vector<1x8x32xf32> to vector<8x32xf32>
    %176 = vector.shape_cast %173 : vector<8x32xf32> to vector<1x8x32xf32>
    tpu.vector_store %arg17[%c0_67, %c0_68, %c0_69], %176 {strides = array<i32>} : memref<1x8x32xf32, #tpu.memory_space<vmem>>, vector<1x8x32xf32>,
    return
  }
  func.func @transform_0(%arg0: i32, %arg1: i32) -> (i32, i32, i32) {
    %c0_i32 = arith.constant 0 : i32
    %c0_i32_0 = arith.constant 0 : i32
    %c0_i32_1 = arith.constant 0 : i32
    return %arg0, %c0_i32, %c0_i32_0 : i32, i32, i32
  }
  func.func @transform_1(%arg0: i32, %arg1: i32) -> (i32, i32, i32) {
    %c0_i32 = arith.constant 0 : i32
    %c0_i32_0 = arith.constant 0 : i32
    %c0_i32_1 = arith.constant 0 : i32
    return %arg0, %c0_i32, %c0_i32_0 : i32, i32, i32
  }
  func.func @transform_2(%arg0: i32, %arg1: i32) -> (i32, i32) {
    %c0_i32 = arith.constant 0 : i32
    %c0_i32_0 = arith.constant 0 : i32
    %c0_i32_1 = arith.constant 0 : i32
    return %c0_i32, %c0_i32_0 : i32, i32
  }
  func.func @transform_3(%arg0: i32, %arg1: i32) -> (i32, i32) {
    %c0_i32 = arith.constant 0 : i32
    %c0_i32_0 = arith.constant 0 : i32
    %c0_i32_1 = arith.constant 0 : i32
    return %c0_i32, %c0_i32_0 : i32, i32
  }
  func.func @transform_4(%arg0: i32, %arg1: i32) -> (i32, i32) {
    %c0_i32 = arith.constant 0 : i32
    %c0_i32_0 = arith.constant 0 : i32
    %c0_i32_1 = arith.constant 0 : i32
    return %c0_i32, %c0_i32_0 : i32, i32
  }
  func.func @transform_5(%arg0: i32, %arg1: i32) -> (i32, i32) {
    %c0_i32 = arith.constant 0 : i32
    %c0_i32_0 = arith.constant 0 : i32
    %c0_i32_1 = arith.constant 0 : i32
    return %c0_i32, %c0_i32_0 : i32, i32
  }
  func.func @transform_6(%arg0: i32, %arg1: i32) -> (i32, i32) {
    %c0_i32 = arith.constant 0 : i32
    %c0_i32_0 = arith.constant 0 : i32
    %c0_i32_1 = arith.constant 0 : i32
    return %c0_i32, %c0_i32_0 : i32, i32
  }
  func.func @transform_7(%arg0: i32, %arg1: i32) -> (i32, i32) {
    %c0_i32 = arith.constant 0 : i32
    %c0_i32_0 = arith.constant 0 : i32
    %c0_i32_1 = arith.constant 0 : i32
    return %c0_i32, %c0_i32_0 : i32, i32
  }
  func.func @transform_8(%arg0: i32, %arg1: i32) -> (i32, i32) {
    %c0_i32 = arith.constant 0 : i32
    %c0_i32_0 = arith.constant 0 : i32
    %c0_i32_1 = arith.constant 0 : i32
    return %c0_i32, %c0_i32_0 : i32, i32
  }
  func.func @transform_9(%arg0: i32, %arg1: i32) -> (i32, i32) {
    %c0_i32 = arith.constant 0 : i32
    %c0_i32_0 = arith.constant 0 : i32
    %c0_i32_1 = arith.constant 0 : i32
    return %c0_i32, %c0_i32_0 : i32, i32
  }
  func.func @transform_10(%arg0: i32, %arg1: i32) -> (i32, i32) {
    %c0_i32 = arith.constant 0 : i32
    %c0_i32_0 = arith.constant 0 : i32
    %c0_i32_1 = arith.constant 0 : i32
    return %c0_i32, %c0_i32_0 : i32, i32
  }
  func.func @transform_11(%arg0: i32, %arg1: i32) -> (i32, i32) {
    %c0_i32 = arith.constant 0 : i32
    %c0_i32_0 = arith.constant 0 : i32
    %c0_i32_1 = arith.constant 0 : i32
    return %c0_i32, %c0_i32_0 : i32, i32
  }
  func.func @transform_12(%arg0: i32, %arg1: i32) -> (i32, i32) {
    %c0_i32 = arith.constant 0 : i32
    %c0_i32_0 = arith.constant 0 : i32
    %c0_i32_1 = arith.constant 0 : i32
    return %c0_i32, %c0_i32_0 : i32, i32
  }
  func.func @transform_13(%arg0: i32, %arg1: i32) -> (i32, i32) {
    %c0_i32 = arith.constant 0 : i32
    %c0_i32_0 = arith.constant 0 : i32
    %c0_i32_1 = arith.constant 0 : i32
    return %c0_i32, %c0_i32_0 : i32, i32
  }
  func.func @transform_14(%arg0: i32, %arg1: i32) -> i32 {
    %c0_i32 = arith.constant 0 : i32
    %c0_i32_0 = arith.constant 0 : i32
    return %c0_i32 : i32
  }
  func.func @transform_15(%arg0: i32, %arg1: i32) -> (i32, i32, i32) {
    %c0_i32 = arith.constant 0 : i32
    %c0_i32_0 = arith.constant 0 : i32
    return %arg0, %arg1, %c0_i32 : i32, i32, i32
  }
}

</mosaic_0001>

<llo_original>
// kernel: tpu_custom_call.1
$region0: #{tpu_custom_call.1}
  #allocation0 [shape = 'u32[]', space=smem, size = 0x4, offset = 0x4, fixed_abs, tag = 'smem constant byte address 0x4 - core index']
  #allocation1 [shape = 'u32[144,128]{1,0:T(1,128)}', space=vmem, size = 0x12000, scoped, tag = 'internal scratch']
  #allocation2 [shape = 'f32[16,32]{1,0:T(8,128)}', space=vmem, size = 0x2000, scoped, tag = 'scratch operand']
  #allocation3 [shape = 'f32[16,32]{1,0:T(8,128)}', space=vmem, size = 0x2000, scoped, tag = 'scratch operand']
  #allocation4 [shape = 'f32[8,32]{1,0:T(8,128)}', space=vmem, size = 0x1000, scoped, tag = 'scratch operand']
  %s0 = inlined_call_operand.vmem [shape: f32[2,16,32], index: 0, kind: input, shape index: {}]
  %s1 = inlined_call_operand.vmem [shape: f32[2,1,16], index: 1, kind: input, shape index: {}]
  %s2 = inlined_call_operand.vmem [shape: f32[32,32], index: 2, kind: input, shape index: {}]
  %s3 = inlined_call_operand.vmem [shape: f32[1,32], index: 3, kind: input, shape index: {}]
  %s4 = inlined_call_operand.vmem [shape: f32[32,32], index: 4, kind: input, shape index: {}]
  %s5 = inlined_call_operand.vmem [shape: f32[1,32], index: 5, kind: input, shape index: {}]
  %s6 = inlined_call_operand.hbm [shape: f32[32,32], index: 6, kind: input, shape index: {}]
  %s7 = inlined_call_operand.vmem [shape: f32[1,32], index: 7, kind: input, shape index: {}]
  %s8 = inlined_call_operand.hbm [shape: f32[32,32], index: 8, kind: input, shape index: {}]
  %s9 = inlined_call_operand.vmem [shape: f32[1,32], index: 9, kind: input, shape index: {}]
  %s10 = inlined_call_operand.hbm [shape: f32[32,64], index: 10, kind: input, shape index: {}]
  %s11 = inlined_call_operand.vmem [shape: f32[1,64], index: 11, kind: input, shape index: {}]
  %s12 = inlined_call_operand.vmem [shape: f32[64,32], index: 12, kind: input, shape index: {}]
  %s13 = inlined_call_operand.vmem [shape: f32[1,32], index: 13, kind: input, shape index: {}]
  %s14 = inlined_call_operand.vmem [shape: f32[4], index: 14, kind: input, shape index: {}]
  %s15 = inlined_call_operand.hbm [shape: f32[2,16,32], index: 15, kind: output, shape index: {}]
  %s16 = sld [smem:[#allocation0]]
  $region113: #{tpu_custom_call.1} parent=0
    _
  %s18 = ssub.s32 1, %s16
  %s19 = scalar_select 0, %s18, %s16
  $region1: #{tpu_custom_call.1} parent=0
    #allocation5 [shape = 'u8[16384]{0}', space=vmem, size = 0x4000, scoped, tag = 'input window, operand 6, single buffered']
    #allocation6 [shape = 's32[2]{0}', space=sflag, size = 0x8, scoped, tag = 'scoped memory for tpu_custom_call.1']
    #allocation7 [shape = 's32[2]{0}', space=sflag, size = 0x8, scoped, tag = 'scoped memory for tpu_custom_call.1']
    #allocation8 [shape = 's32[2]{0}', space=sflag, size = 0x8, scoped, tag = 'scoped memory for tpu_custom_call.1']
    #allocation9 [shape = 'u8[16384]{0}', space=vmem, size = 0x4000, scoped, tag = 'input window, operand 8, single buffered']
    #allocation10 [shape = 's32[1]{0}', space=sflag, size = 0x4, scoped, tag = 'scoped memory for tpu_custom_call.1']
    #allocation11 [shape = 'u8[16384]{0}', space=vmem, size = 0x4000, scoped, tag = 'input window, operand 10, single buffered']
    #allocation12 [shape = 'u8[512]{0}', space=smem, size = 0x200, scoped, tag = 'input window, operand 14, single buffered']
    #allocation13 [shape = 'u8[8192]{0}', space=vmem, size = 0x2000, scoped, tag = 'output window, operand 0']
    %20 = vsyncpa [#allocation6], 0
    %21 = vsyncpa [#allocation10], 0
    %22 = vsyncpa [#allocation8], 0
    %23 = vsyncpa [#allocation7], 0
    %s24 = scalar_lea.sflag [#allocation7], 1
    %25 = vsyncpa %s24, 0
    loop: start=0, step=1, limit=6
    $region2: #{tpu_custom_call.1} parent=1 // loop_pre_header
      _
    $region3: #{tpu_custom_call.1} parent=1 // loop_header
      %s27 = sphi 0, %s31
      %p28 = scmp.ge.s32.totalorder %s27, 6
      %s34 = sphi 0, %s46
      %s35 = sphi 0, %s42
      %s36 = sphi 0, %s34
      %s37 = sphi 0, %s35
      %s38 = sphi 0, %s36
      %s39 = sphi 0, %s37
      %s49 = sphi 0, %s51
      %s52 = sphi 0, %s49
      %s53 = sphi 0, %s52
      %s69 = sphi 0, %s53
      %s75 = sphi 0, %s77
      %s78 = sphi 0, %s75
      %s79 = sphi 0, %s78
      %s95 = sphi 0, %s79
      %s99 = sphi 0, %s99
      %s101 = sphi 0, %s99
      %s102 = sphi 0, %s101
      %s116 = sphi 0, %s102
      %s120 = sphi 0, %s120
      %s122 = sphi 0, %s120
      %s123 = sphi 0, %s122
      %s137 = sphi 0, %s123
      %s141 = sphi 0, %s141
      %s143 = sphi 0, %s141
      %s144 = sphi 0, %s143
      %s158 = sphi 0, %s144
      %s162 = sphi 0, %s162
      %s164 = sphi 0, %s162
      %s165 = sphi 0, %s164
      %s179 = sphi 0, %s165
      %s183 = sphi 0, %s183
      %s185 = sphi 0, %s183
      %s186 = sphi 0, %s185
      %s200 = sphi 0, %s186
      %s204 = sphi 0, %s204
      %s206 = sphi 0, %s204
      %s207 = sphi 0, %s206
      %s221 = sphi 0, %s207
      %s225 = sphi 0, %s225
      %s227 = sphi 0, %s225
      %s228 = sphi 0, %s227
      %s242 = sphi 0, %s228
      %s246 = sphi 0, %s246
      %s248 = sphi 0, %s246
      %s249 = sphi 0, %s248
      %s263 = sphi 0, %s249
      %s267 = sphi 0, %s267
      %s269 = sphi 0, %s267
      %s270 = sphi 0, %s269
      %s284 = sphi 0, %s270
      %s288 = sphi 0, %s288
      %s290 = sphi 0, %s288
      %s291 = sphi 0, %s290
      %s305 = sphi 0, %s291
      %s309 = sphi 0, %s309
      %s311 = sphi 0, %s309
      %s312 = sphi 0, %s311
      %s326 = sphi 0, %s312
      %s330 = sphi 0, %s330
      %s332 = sphi 0, %s330
      %s333 = sphi 0, %s332
      %s347 = sphi 0, %s333
      %s351 = sphi 0, %s351
      %s353 = sphi 0, %s351
      %s354 = sphi 0, %s353
      %s368 = sphi 0, %s354
      %s376 = sphi 0, %s378
      %s379 = sphi 0, %s376
      %s380 = sphi 0, %s379
      %s396 = sphi 0, %s380
    $region4: #{tpu_custom_call.1} parent=1 // loop_header_branch
      %30 = sbr.rel (%p28) target = $region8
    $region5: #{tpu_custom_call.1} parent=1 // loop_body
      %s32 = ssub.s32 %s27, 1
      %s33 = ssub.s32 %s27, 2
      %s40 = sadd.s32 1, %s35
      %p41 = scmp.ge.s32.totalorder %s40, 2
      %s42 = scalar_select %p41, 0, %s40
      %s43 = sadd.s32 1, %s34
      %s44 = scalar_select %p41, %s43, %s34
      %p45 = scmp.ge.s32.totalorder %s44, 2
      %s46 = scalar_select %p45, 0, %s44
      %s47 = ssub.s32 %s34, %s46
      %p48 = scmp.eq.s32.totalorder %s47, 0
      %s50 = sadd.s32 %s49, 1
      %s51 = scalar_select %p48, %s49, %s50
      %p54 = pneg %p48
      %p55 = scmp.eq.s32.totalorder %s27, 3
      %p56 = por %p54, %p55
      %p57 = scmp.ne.s32.totalorder %s49, %s52
      %p58 = scmp.eq.s32.totalorder %s27, 0
      %p59 = por %p57, %p58
      %p60 = scmp.ne.s32.totalorder %s49, %s52
      %p61 = scmp.eq.s32.totalorder %s32, 3
      %p62 = por %p60, %p61
      %p63 = scmp.ne.s32.totalorder %s52, %s53
      %p64 = scmp.eq.s32.totalorder %s32, 0
      %p65 = por %p63, %p64
      %p66 = scmp.ne.s32.totalorder %s52, %s53
      %p67 = scmp.eq.s32.totalorder %s33, 3
      %p68 = por %p66, %p67
      %p70 = scmp.ne.s32.totalorder %s53, %s69
      %p71 = scmp.eq.s32.totalorder %s33, 0
      %p72 = por %p70, %p71
      %s73 = ssub.s32 %s34, %s46
      %p74 = scmp.eq.s32.totalorder %s73, 0
      %s76 = sadd.s32 %s75, 1
      %s77 = scalar_select %p74, %s75, %s76
      %p80 = pneg %p74
      %p81 = scmp.eq.s32.totalorder %s27, 3
      %p82 = por %p80, %p81
      %p83 = scmp.ne.s32.totalorder %s75, %s78
      %p84 = scmp.eq.s32.totalorder %s27, 0
      %p85 = por %p83, %p84
      %p86 = scmp.ne.s32.totalorder %s75, %s78
      %p87 = scmp.eq.s32.totalorder %s32, 3
      %p88 = por %p86, %p87
      %p89 = scmp.ne.s32.totalorder %s78, %s79
      %p90 = scmp.eq.s32.totalorder %s32, 0
      %p91 = por %p89, %p90
      %p92 = scmp.ne.s32.totalorder %s78, %s79
      %p93 = scmp.eq.s32.totalorder %s33, 3
      %p94 = por %p92, %p93
      %p96 = scmp.ne.s32.totalorder %s79, %s95
      %p97 = scmp.eq.s32.totalorder %s33, 0
      %p98 = por %p96, %p97
      %s100 = sadd.s32 %s99, 1
      %p103 = scmp.eq.s32.totalorder %s27, 3
      %p104 = scmp.ne.s32.totalorder %s99, %s101
      %p105 = scmp.eq.s32.totalorder %s27, 0
      %p106 = por %p104, %p105
      %p107 = scmp.ne.s32.totalorder %s99, %s101
      %p108 = scmp.eq.s32.totalorder %s32, 3
      %p109 = por %p107, %p108
      %p110 = scmp.ne.s32.totalorder %s101, %s102
      %p111 = scmp.eq.s32.totalorder %s32, 0
      %p112 = por %p110, %p111
      %p113 = scmp.ne.s32.totalorder %s101, %s102
      %p114 = scmp.eq.s32.totalorder %s33, 3
      %p115 = por %p113, %p114
      %p117 = scmp.ne.s32.totalorder %s102, %s116
      %p118 = scmp.eq.s32.totalorder %s33, 0
      %p119 = por %p117, %p118
      %s121 = sadd.s32 %s120, 1
      %p124 = scmp.eq.s32.totalorder %s27, 3
      %p125 = scmp.ne.s32.totalorder %s120, %s122
      %p126 = scmp.eq.s32.totalorder %s27, 0
      %p127 = por %p125, %p126
      %p128 = scmp.ne.s32.totalorder %s120, %s122
      %p129 = scmp.eq.s32.totalorder %s32, 3
      %p130 = por %p128, %p129
      %p131 = scmp.ne.s32.totalorder %s122, %s123
      %p132 = scmp.eq.s32.totalorder %s32, 0
      %p133 = por %p131, %p132
      %p134 = scmp.ne.s32.totalorder %s122, %s123
      %p135 = scmp.eq.s32.totalorder %s33, 3
      %p136 = por %p134, %p135
      %p138 = scmp.ne.s32.totalorder %s123, %s137
      %p139 = scmp.eq.s32.totalorder %s33, 0
      %p140 = por %p138, %p139
      %s142 = sadd.s32 %s141, 1
      %p145 = scmp.eq.s32.totalorder %s27, 3
      %p146 = scmp.ne.s32.totalorder %s141, %s143
      %p147 = scmp.eq.s32.totalorder %s27, 0
      %p148 = por %p146, %p147
      %p149 = scmp.ne.s32.totalorder %s141, %s143
      %p150 = scmp.eq.s32.totalorder %s32, 3
      %p151 = por %p149, %p150
      %p152 = scmp.ne.s32.totalorder %s143, %s144
      %p153 = scmp.eq.s32.totalorder %s32, 0
      %p154 = por %p152, %p153
      %p155 = scmp.ne.s32.totalorder %s143, %s144
      %p156 = scmp.eq.s32.totalorder %s33, 3
      %p157 = por %p155, %p156
      %p159 = scmp.ne.s32.totalorder %s144, %s158
      %p160 = scmp.eq.s32.totalorder %s33, 0
      %p161 = por %p159, %p160
      %s163 = sadd.s32 %s162, 1
      %p166 = scmp.eq.s32.totalorder %s27, 3
      %p167 = scmp.ne.s32.totalorder %s162, %s164
      %p168 = scmp.eq.s32.totalorder %s27, 0
      %p169 = por %p167, %p168
      %p170 = scmp.ne.s32.totalorder %s162, %s164
      %p171 = scmp.eq.s32.totalorder %s32, 3
      %p172 = por %p170, %p171
      %p173 = scmp.ne.s32.totalorder %s164, %s165
      %p174 = scmp.eq.s32.totalorder %s32, 0
      %p175 = por %p173, %p174
      %p176 = scmp.ne.s32.totalorder %s164, %s165
      %p177 = scmp.eq.s32.totalorder %s33, 3
      %p178 = por %p176, %p177
      %p180 = scmp.ne.s32.totalorder %s165, %s179
      %p181 = scmp.eq.s32.totalorder %s33, 0
      %p182 = por %p180, %p181
      %s184 = sadd.s32 %s183, 1
      %p187 = scmp.eq.s32.totalorder %s27, 3
      %p188 = scmp.ne.s32.totalorder %s183, %s185
      %p189 = scmp.eq.s32.totalorder %s27, 0
      %p190 = por %p188, %p189
      %p191 = scmp.ne.s32.totalorder %s183, %s185
      %p192 = scmp.eq.s32.totalorder %s32, 3
      %p193 = por %p191, %p192
      %p194 = scmp.ne.s32.totalorder %s185, %s186
      %p195 = scmp.eq.s32.totalorder %s32, 0
      %p196 = por %p194, %p195
      %p197 = scmp.ne.s32.totalorder %s185, %s186
      %p198 = scmp.eq.s32.totalorder %s33, 3
      %p199 = por %p197, %p198
      %p201 = scmp.ne.s32.totalorder %s186, %s200
      %p202 = scmp.eq.s32.totalorder %s33, 0
      %p203 = por %p201, %p202
      %s205 = sadd.s32 %s204, 1
      %p208 = scmp.eq.s32.totalorder %s27, 3
      %p209 = scmp.ne.s32.totalorder %s204, %s206
      %p210 = scmp.eq.s32.totalorder %s27, 0
      %p211 = por %p209, %p210
      %p212 = scmp.ne.s32.totalorder %s204, %s206
      %p213 = scmp.eq.s32.totalorder %s32, 3
      %p214 = por %p212, %p213
      %p215 = scmp.ne.s32.totalorder %s206, %s207
      %p216 = scmp.eq.s32.totalorder %s32, 0
      %p217 = por %p215, %p216
      %p218 = scmp.ne.s32.totalorder %s206, %s207
      %p219 = scmp.eq.s32.totalorder %s33, 3
      %p220 = por %p218, %p219
      %p222 = scmp.ne.s32.totalorder %s207, %s221
      %p223 = scmp.eq.s32.totalorder %s33, 0
      %p224 = por %p222, %p223
      %s226 = sadd.s32 %s225, 1
      %p229 = scmp.eq.s32.totalorder %s27, 3
      %p230 = scmp.ne.s32.totalorder %s225, %s227
      %p231 = scmp.eq.s32.totalorder %s27, 0
      %p232 = por %p230, %p231
      %p233 = scmp.ne.s32.totalorder %s225, %s227
      %p234 = scmp.eq.s32.totalorder %s32, 3
      %p235 = por %p233, %p234
      %p236 = scmp.ne.s32.totalorder %s227, %s228
      %p237 = scmp.eq.s32.totalorder %s32, 0
      %p238 = por %p236, %p237
      %p239 = scmp.ne.s32.totalorder %s227, %s228
      %p240 = scmp.eq.s32.totalorder %s33, 3
      %p241 = por %p239, %p240
      %p243 = scmp.ne.s32.totalorder %s228, %s242
      %p244 = scmp.eq.s32.totalorder %s33, 0
      %p245 = por %p243, %p244
      %s247 = sadd.s32 %s246, 1
      %p250 = scmp.eq.s32.totalorder %s27, 3
      %p251 = scmp.ne.s32.totalorder %s246, %s248
      %p252 = scmp.eq.s32.totalorder %s27, 0
      %p253 = por %p251, %p252
      %p254 = scmp.ne.s32.totalorder %s246, %s248
      %p255 = scmp.eq.s32.totalorder %s32, 3
      %p256 = por %p254, %p255
      %p257 = scmp.ne.s32.totalorder %s248, %s249
      %p258 = scmp.eq.s32.totalorder %s32, 0
      %p259 = por %p257, %p258
      %p260 = scmp.ne.s32.totalorder %s248, %s249
      %p261 = scmp.eq.s32.totalorder %s33, 3
      %p262 = por %p260, %p261
      %p264 = scmp.ne.s32.totalorder %s249, %s263
      %p265 = scmp.eq.s32.totalorder %s33, 0
      %p266 = por %p264, %p265
      %s268 = sadd.s32 %s267, 1
      %p271 = scmp.eq.s32.totalorder %s27, 3
      %p272 = scmp.ne.s32.totalorder %s267, %s269
      %p273 = scmp.eq.s32.totalorder %s27, 0
      %p274 = por %p272, %p273
      %p275 = scmp.ne.s32.totalorder %s267, %s269
      %p276 = scmp.eq.s32.totalorder %s32, 3
      %p277 = por %p275, %p276
      %p278 = scmp.ne.s32.totalorder %s269, %s270
      %p279 = scmp.eq.s32.totalorder %s32, 0
      %p280 = por %p278, %p279
      %p281 = scmp.ne.s32.totalorder %s269, %s270
      %p282 = scmp.eq.s32.totalorder %s33, 3
      %p283 = por %p281, %p282
      %p285 = scmp.ne.s32.totalorder %s270, %s284
      %p286 = scmp.eq.s32.totalorder %s33, 0
      %p287 = por %p285, %p286
      %s289 = sadd.s32 %s288, 1
      %p292 = scmp.eq.s32.totalorder %s27, 3
      %p293 = scmp.ne.s32.totalorder %s288, %s290
      %p294 = scmp.eq.s32.totalorder %s27, 0
      %p295 = por %p293, %p294
      %p296 = scmp.ne.s32.totalorder %s288, %s290
      %p297 = scmp.eq.s32.totalorder %s32, 3
      %p298 = por %p296, %p297
      %p299 = scmp.ne.s32.totalorder %s290, %s291
      %p300 = scmp.eq.s32.totalorder %s32, 0
      %p301 = por %p299, %p300
      %p302 = scmp.ne.s32.totalorder %s290, %s291
      %p303 = scmp.eq.s32.totalorder %s33, 3
      %p304 = por %p302, %p303
      %p306 = scmp.ne.s32.totalorder %s291, %s305
      %p307 = scmp.eq.s32.totalorder %s33, 0
      %p308 = por %p306, %p307
      %s310 = sadd.s32 %s309, 1
      %p313 = scmp.eq.s32.totalorder %s27, 3
      %p314 = scmp.ne.s32.totalorder %s309, %s311
      %p315 = scmp.eq.s32.totalorder %s27, 0
      %p316 = por %p314, %p315
      %p317 = scmp.ne.s32.totalorder %s309, %s311
      %p318 = scmp.eq.s32.totalorder %s32, 3
      %p319 = por %p317, %p318
      %p320 = scmp.ne.s32.totalorder %s311, %s312
      %p321 = scmp.eq.s32.totalorder %s32, 0
      %p322 = por %p320, %p321
      %p323 = scmp.ne.s32.totalorder %s311, %s312
      %p324 = scmp.eq.s32.totalorder %s33, 3
      %p325 = por %p323, %p324
      %p327 = scmp.ne.s32.totalorder %s312, %s326
      %p328 = scmp.eq.s32.totalorder %s33, 0
      %p329 = por %p327, %p328
      %s331 = sadd.s32 %s330, 1
      %p334 = scmp.eq.s32.totalorder %s27, 3
      %p335 = scmp.ne.s32.totalorder %s330, %s332
      %p336 = scmp.eq.s32.totalorder %s27, 0
      %p337 = por %p335, %p336
      %p338 = scmp.ne.s32.totalorder %s330, %s332
      %p339 = scmp.eq.s32.totalorder %s32, 3
      %p340 = por %p338, %p339
      %p341 = scmp.ne.s32.totalorder %s332, %s333
      %p342 = scmp.eq.s32.totalorder %s32, 0
      %p343 = por %p341, %p342
      %p344 = scmp.ne.s32.totalorder %s332, %s333
      %p345 = scmp.eq.s32.totalorder %s33, 3
      %p346 = por %p344, %p345
      %p348 = scmp.ne.s32.totalorder %s333, %s347
      %p349 = scmp.eq.s32.totalorder %s33, 0
      %p350 = por %p348, %p349
      %s352 = sadd.s32 %s351, 1
      %p355 = scmp.eq.s32.totalorder %s27, 3
      %p356 = scmp.ne.s32.totalorder %s351, %s353
      %p357 = scmp.eq.s32.totalorder %s27, 0
      %p358 = por %p356, %p357
      %p359 = scmp.ne.s32.totalorder %s351, %s353
      %p360 = scmp.eq.s32.totalorder %s32, 3
      %p361 = por %p359, %p360
      %p362 = scmp.ne.s32.totalorder %s353, %s354
      %p363 = scmp.eq.s32.totalorder %s32, 0
      %p364 = por %p362, %p363
      %p365 = scmp.ne.s32.totalorder %s353, %s354
      %p366 = scmp.eq.s32.totalorder %s33, 3
      %p367 = por %p365, %p366
      %p369 = scmp.ne.s32.totalorder %s354, %s368
      %p370 = scmp.eq.s32.totalorder %s33, 0
      %p371 = por %p369, %p370
      %s372 = ssub.s32 %s34, %s46
      %s373 = ssub.s32 %s35, %s42
      %s374 = sor.u32 %s372, %s373
      %p375 = scmp.eq.s32.totalorder %s374, 0
      %s377 = sadd.s32 %s376, 1
      %s378 = scalar_select %p375, %s376, %s377
      %p381 = pneg %p375
      %p382 = scmp.eq.s32.totalorder %s27, 3
      %p383 = por %p381, %p382
      %p384 = scmp.ne.s32.totalorder %s376, %s379
      %p385 = scmp.eq.s32.totalorder %s27, 0
      %p386 = por %p384, %p385
      %p387 = scmp.ne.s32.totalorder %s376, %s379
      %p388 = scmp.eq.s32.totalorder %s32, 3
      %p389 = por %p387, %p388
      %p390 = scmp.ne.s32.totalorder %s379, %s380
      %p391 = scmp.eq.s32.totalorder %s32, 0
      %p392 = por %p390, %p391
      %p393 = scmp.ne.s32.totalorder %s379, %s380
      %p394 = scmp.eq.s32.totalorder %s33, 3
      %p395 = por %p393, %p394
      %p397 = scmp.ne.s32.totalorder %s380, %s396
      %p398 = scmp.eq.s32.totalorder %s33, 0
      %p399 = por %p397, %p398
      %p400 = scmp.le.s32.totalorder 1, %s27
      %p401 = scmp.lt.s32.totalorder %s27, 5
      %p402 = pnand %p400, %p401
      %p403 = pneg %p402
      // Predicated region
      $region9: #{tpu_custom_call.1} parent=5 // pred_check
        _
      $region10: #{tpu_custom_call.1} parent=5 // pred_check_branch
        %405 = sbr.rel (%p402) target = $region12
      $region11: #{tpu_custom_call.1} parent=5 // pred_region
        %s406 = ssub.s32 %s27, 1
        // Predicated region
        $region13: #{tpu_custom_call.1} parent=11 // pred_check
          %p407 = pneg %p112
        $region14: #{tpu_custom_call.1} parent=11 // pred_check_branch
          %409 = sbr.rel (%p407) target = $region16
        $region15: #{tpu_custom_call.1} parent=11 // pred_region
          _
        $region16: #{tpu_custom_call.1} parent=11 // pred_fallthru
          _
        // Predicated region
        $region17: #{tpu_custom_call.1} parent=11 // pred_check
          %p410 = pneg %p133
        $region18: #{tpu_custom_call.1} parent=11 // pred_check_branch
          %412 = sbr.rel (%p410) target = $region20
        $region19: #{tpu_custom_call.1} parent=11 // pred_region
          _
        $region20: #{tpu_custom_call.1} parent=11 // pred_fallthru
          _
        // Predicated region
        $region21: #{tpu_custom_call.1} parent=11 // pred_check
          %p413 = pneg %p154
        $region22: #{tpu_custom_call.1} parent=11 // pred_check_branch
          %415 = sbr.rel (%p413) target = $region24
        $region23: #{tpu_custom_call.1} parent=11 // pred_region
          _
        $region24: #{tpu_custom_call.1} parent=11 // pred_fallthru
          _
        // Predicated region
        $region25: #{tpu_custom_call.1} parent=11 // pred_check
          %p416 = pneg %p175
        $region26: #{tpu_custom_call.1} parent=11 // pred_check_branch
          %418 = sbr.rel (%p416) target = $region28
        $region27: #{tpu_custom_call.1} parent=11 // pred_region
          _
        $region28: #{tpu_custom_call.1} parent=11 // pred_fallthru
          _
        // Predicated region
        $region29: #{tpu_custom_call.1} parent=11 // pred_check
          %p419 = pneg %p196
        $region30: #{tpu_custom_call.1} parent=11 // pred_check_branch
          %421 = sbr.rel (%p419) target = $region32
        $region31: #{tpu_custom_call.1} parent=11 // pred_region
          %s423 = ssub.s32 512, 512
          %424 = vsyncadd [#allocation6], %s423
          %s425 = sshll.u32 [#allocation5], 4
          %s426 = int_to_ptr.vmem [resolvable:$true] %s425
          %431 = dma.hbm_to_vmem [thread:$0]  %s6, 512, %s426, [#allocation6], 128, 128, 8
        $region32: #{tpu_custom_call.1} parent=11 // pred_fallthru
          _
        // Predicated region
        $region33: #{tpu_custom_call.1} parent=11 // pred_check
          %p432 = pneg %p217
        $region34: #{tpu_custom_call.1} parent=11 // pred_check_branch
          %434 = sbr.rel (%p432) target = $region36
        $region35: #{tpu_custom_call.1} parent=11 // pred_region
          _
        $region36: #{tpu_custom_call.1} parent=11 // pred_fallthru
          _
        // Predicated region
        $region37: #{tpu_custom_call.1} parent=11 // pred_check
          %p435 = pneg %p238
        $region38: #{tpu_custom_call.1} parent=11 // pred_check_branch
          %437 = sbr.rel (%p435) target = $region40
        $region39: #{tpu_custom_call.1} parent=11 // pred_region
          %s439 = ssub.s32 512, 512
          %440 = vsyncadd [#allocation10], %s439
          %s441 = sshll.u32 [#allocation9], 4
          %s442 = int_to_ptr.vmem [resolvable:$true] %s441
          %447 = dma.hbm_to_vmem [thread:$0]  %s8, 512, %s442, [#allocation10], 128, 128, 8
        $region40: #{tpu_custom_call.1} parent=11 // pred_fallthru
          _
        // Predicated region
        $region41: #{tpu_custom_call.1} parent=11 // pred_check
          %p448 = pneg %p259
        $region42: #{tpu_custom_call.1} parent=11 // pred_check_branch
          %450 = sbr.rel (%p448) target = $region44
        $region43: #{tpu_custom_call.1} parent=11 // pred_region
          _
        $region44: #{tpu_custom_call.1} parent=11 // pred_fallthru
          _
        // Predicated region
        $region45: #{tpu_custom_call.1} parent=11 // pred_check
          %p451 = pneg %p280
        $region46: #{tpu_custom_call.1} parent=11 // pred_check_branch
          %453 = sbr.rel (%p451) target = $region48
        $region47: #{tpu_custom_call.1} parent=11 // pred_region
          %s455 = ssub.s32 512, 512
          %456 = vsyncadd [#allocation10], %s455
          %s457 = sshll.u32 [#allocation11], 4
          %s458 = int_to_ptr.vmem [resolvable:$true] %s457
          %463 = dma.hbm_to_vmem [thread:$0]  %s10, 512, %s458, [#allocation10], 128, 128, 8
        $region48: #{tpu_custom_call.1} parent=11 // pred_fallthru
          _
        // Predicated region
        $region49: #{tpu_custom_call.1} parent=11 // pred_check
          %p464 = pneg %p301
        $region50: #{tpu_custom_call.1} parent=11 // pred_check_branch
          %466 = sbr.rel (%p464) target = $region52
        $region51: #{tpu_custom_call.1} parent=11 // pred_region
          _
        $region52: #{tpu_custom_call.1} parent=11 // pred_fallthru
          _
        // Predicated region
        $region53: #{tpu_custom_call.1} parent=11 // pred_check
          %p467 = pneg %p322
        $region54: #{tpu_custom_call.1} parent=11 // pred_check_branch
          %469 = sbr.rel (%p467) target = $region56
        $region55: #{tpu_custom_call.1} parent=11 // pred_region
          _
        $region56: #{tpu_custom_call.1} parent=11 // pred_fallthru
          _
        // Predicated region
        $region57: #{tpu_custom_call.1} parent=11 // pred_check
          %p470 = pneg %p343
        $region58: #{tpu_custom_call.1} parent=11 // pred_check_branch
          %472 = sbr.rel (%p470) target = $region60
        $region59: #{tpu_custom_call.1} parent=11 // pred_region
          _
        $region60: #{tpu_custom_call.1} parent=11 // pred_fallthru
          _
        // Predicated region
        $region61: #{tpu_custom_call.1} parent=11 // pred_check
          %p473 = pneg %p364
        $region62: #{tpu_custom_call.1} parent=11 // pred_check_branch
          %475 = sbr.rel (%p473) target = $region64
        $region63: #{tpu_custom_call.1} parent=11 // pred_region
          %s477 = ssub.s32 16, 16
          %478 = vsyncadd [#allocation8], %s477
          %s480 = sshll.u32 %s14, 4
          %s481 = int_to_ptr.vmem [resolvable:$true] %s480
          %483 = dma.vmem_to_smem %s481, 16, [#allocation12], [#allocation8]
        $region64: #{tpu_custom_call.1} parent=11 // pred_fallthru
          _
      $region12: #{tpu_custom_call.1} parent=5 // pred_fallthru
        _
      %p484 = scmp.lt.s32.totalorder %s27, 4
      // Predicated region
      $region65: #{tpu_custom_call.1} parent=5 // pred_check
        %p485 = pneg %p484
      $region66: #{tpu_custom_call.1} parent=5 // pred_check_branch
        %487 = sbr.rel (%p485) target = $region68
      $region67: #{tpu_custom_call.1} parent=5 // pred_region
        // Predicated region
        $region69: #{tpu_custom_call.1} parent=67 // pred_check
          %p488 = pneg %p59
        $region70: #{tpu_custom_call.1} parent=67 // pred_check_branch
          %490 = sbr.rel (%p488) target = $region72
        $region71: #{tpu_custom_call.1} parent=67 // pred_region
          %p491 = scmp.lt.s32.totalorder %s34, 1
          %s492 = scalar_select %p491, %s34, 1
          %s493 = smul.addr %s492, 2
          %s494 = smul.addr %s493, 8
          %s495 = scalar_lea.vmem %s0, %s494
        $region72: #{tpu_custom_call.1} parent=67 // pred_fallthru
          _
        // Predicated region
        $region73: #{tpu_custom_call.1} parent=67 // pred_check
          %p496 = pneg %p85
        $region74: #{tpu_custom_call.1} parent=67 // pred_check_branch
          %498 = sbr.rel (%p496) target = $region76
        $region75: #{tpu_custom_call.1} parent=67 // pred_region
          %p499 = scmp.lt.s32.totalorder %s34, 1
          %s500 = scalar_select %p499, %s34, 1
          %s501 = scalar_lea.vmem %s1, %s500
        $region76: #{tpu_custom_call.1} parent=67 // pred_fallthru
          _
      $region68: #{tpu_custom_call.1} parent=5 // pred_fallthru
        _
      %p502 = scmp.le.s32.totalorder 1, %s27
      %p503 = scmp.lt.s32.totalorder %s27, 5
      %p504 = pnand %p502, %p503
      %p505 = pneg %p504
      // Predicated region
      $region77: #{tpu_custom_call.1} parent=5 // pred_check
        _
      $region78: #{tpu_custom_call.1} parent=5 // pred_check_branch
        %507 = sbr.rel (%p504) target = $region80
      $region79: #{tpu_custom_call.1} parent=5 // pred_region
        %s508 = ssub.s32 %s27, 1
        // Predicated region
        $region81: #{tpu_custom_call.1} parent=79 // pred_check
          %p509 = pneg %p196
        $region82: #{tpu_custom_call.1} parent=79 // pred_check_branch
          %511 = sbr.rel (%p509) target = $region84
        $region83: #{tpu_custom_call.1} parent=79 // pred_region
          %512 = dma.done [#allocation6], 512
        $region84: #{tpu_custom_call.1} parent=79 // pred_fallthru
          _
        // Predicated region
        $region85: #{tpu_custom_call.1} parent=79 // pred_check
          %p513 = pneg %p238
        $region86: #{tpu_custom_call.1} parent=79 // pred_check_branch
          %515 = sbr.rel (%p513) target = $region88
        $region87: #{tpu_custom_call.1} parent=79 // pred_region
          %516 = dma.done [#allocation10], 512
        $region88: #{tpu_custom_call.1} parent=79 // pred_fallthru
          _
        // Predicated region
        $region89: #{tpu_custom_call.1} parent=79 // pred_check
          %p517 = pneg %p280
        $region90: #{tpu_custom_call.1} parent=79 // pred_check_branch
          %519 = sbr.rel (%p517) target = $region92
        $region91: #{tpu_custom_call.1} parent=79 // pred_region
          %520 = dma.done [#allocation10], 512
        $region92: #{tpu_custom_call.1} parent=79 // pred_fallthru
          _
        // Predicated region
        $region93: #{tpu_custom_call.1} parent=79 // pred_check
          %p521 = pneg %p364
        $region94: #{tpu_custom_call.1} parent=79 // pred_check_branch
          %523 = sbr.rel (%p521) target = $region96
        $region95: #{tpu_custom_call.1} parent=79 // pred_region
          %524 = dma.done [#allocation8], 16
        $region96: #{tpu_custom_call.1} parent=79 // pred_fallthru
          _
        %525 = sfence
        %p526 = scmp.lt.s32.totalorder %s36, 1
        %s527 = scalar_select %p526, %s36, 1
        %s528 = smul.addr %s527, 2
        %s529 = smul.addr %s528, 8
        %s530 = scalar_lea.vmem %s0, %s529
        %p531 = pneg %p65
        %p532 = pneg %p62
        %p533 = scmp.lt.s32.totalorder %s36, 1
        %s534 = scalar_select %p533, %s36, 1
        %s535 = scalar_lea.vmem %s1, %s534
        %p536 = pneg %p91
        %p537 = pneg %p88
        %p538 = pneg %p112
        %p539 = pneg %p109
        %p540 = pneg %p133
        %p541 = pneg %p130
        %p542 = pneg %p154
        %p543 = pneg %p151
        %p544 = pneg %p175
        %p545 = pneg %p172
        %p546 = pneg %p196
        %p547 = pneg %p193
        %p548 = pneg %p217
        %p549 = pneg %p214
        %p550 = pneg %p238
        %p551 = pneg %p235
        %p552 = pneg %p259
        %p553 = pneg %p256
        %p554 = pneg %p280
        %p555 = pneg %p277
        %p556 = pneg %p301
        %p557 = pneg %p298
        %p558 = pneg %p322
        %p559 = pneg %p319
        %p560 = pneg %p343
        %p561 = pneg %p340
        %p562 = pneg %p364
        %p563 = pneg %p361
        %p564 = pneg %p392
        %p565 = pneg %p389
        %s566 = sand.u32 %s379, 1
        %s567 = scalar_lea.sflag [#allocation7], %s566
        %s568 = sand.u32 %s379, 1
        %s569 = smul.addr %s568, 8
        %s570 = scalar_lea.vmem [#allocation13], %s569
        %p571 = scmp.lt.s32.totalorder %s36, 1
        %s572 = scalar_select %p571, %s36, 1
        %s573 = smul.addr %s572, 2
        %s574 = smul.addr %s573, 8
        %s575 = scalar_lea.vmem %s0, %s574
        %p576 = scmp.lt.s32.totalorder %s36, 1
        %s577 = scalar_select %p576, %s36, 1
        %s578 = scalar_lea.vmem %s1, %s577
        %s579 = sld [smem:[#allocation12]]
        %s580 = sld [smem:[#allocation12 + $0x1]]
        %s581 = sld [smem:[#allocation12 + $0x2]]
        %s582 = sld [smem:[#allocation12 + $0x3]]
        %p583 = scmp.eq.s32.totalorder %s37, 0
        // Predicated region
        $region97: #{tpu_custom_call.1} parent=79 // pred_check
          %p584 = pneg %p583
        $region98: #{tpu_custom_call.1} parent=79 // pred_check_branch
          %586 = sbr.rel (%p584) target = $region100
        $region99: #{tpu_custom_call.1} parent=79 // pred_region
          %v587 = vld [vmem:[%s575] sm:$0xff]
          %v588 = vld [vmem:[%s575 + $0x8] sm:$0xff]
          %vm589 = vcmask 261120
          %v590 = vsel %vm589, %v587, 0.0
          %591 = vadd.xlane.f32.xlu0 %v590
          %v592 = vpop.xlane.xlu0 %591
          %v593 = vsel %vm589, %v588, 0.0
          %594 = vadd.xlane.f32.xlu0 %v593
          %v595 = vpop.xlane.xlu0 %594
          %v596 = vrcp.pop 32.0
          %v597 = vmul.f32 %v592, %v596
          %v598 = vmul.f32 %v595, %v596
          %v599 = vsub.f32 %v587, %v597
          %v600 = vsub.f32 %v588, %v598
          %v601 = vmul.f32 %v599, %v599
          %v602 = vmul.f32 %v600, %v600
          %v603 = vsel %vm589, %v601, 0.0
          %604 = vadd.xlane.f32.xlu0 %v603
          %v605 = vpop.xlane.xlu0 %604
          %v606 = vsel %vm589, %v602, 0.0
          %607 = vadd.xlane.f32.xlu0 %v606
          %v608 = vpop.xlane.xlu0 %607
          %v609 = vmul.f32 %v605, 0.032258064
          %v610 = vmul.f32 %v608, 0.032258064
          %v611 = vrsqrt.pop %v609
          %v612 = vmul.f32 %v609, %v611
          %vm613 = vcmp.eq.f32.partialorder %v609, inf
          %v614 = vsel %vm613, %v609, %v612
          %vm615 = vcmp.eq.f32.partialorder %v609, 0.0
          %v616 = vand.u32 %v609, 2147483648
          %v617 = vsel %vm615, %v616, %v614
          %v618 = vrsqrt.pop %v610
          %v619 = vmul.f32 %v610, %v618
          %vm620 = vcmp.eq.f32.partialorder %v610, inf
          %v621 = vsel %vm620, %v610, %v619
          %vm622 = vcmp.eq.f32.partialorder %v610, 0.0
          %v623 = vand.u32 %v610, 2147483648
          %v624 = vsel %vm622, %v623, %v621
          %v625 = vadd.f32 %v617, 1e-06
          %v626 = vadd.f32 %v624, 1e-06
          %v627 = vrcp.pop %v625
          %v628 = vrcp.pop %v626
          %v629 = vstv %s579
          %v630 = vmul.f32 %v629, %v599
          %v631 = vmul.f32 %v629, %v600
          %v632 = vmul.f32 %v630, %v627
          %v633 = vmul.f32 %v631, %v628
          %v634 = vstv %s580
          %v635 = vadd.f32 %v632, %v634
          %v636 = vadd.f32 %v633, %v634
          %v637 = vld [vmem:[%s4] sm:$0xff]
          %v638 = vld [vmem:[%s4 + $0x8] sm:$0xff]
          %v639 = vld [vmem:[%s4 + $0x10] sm:$0xff]
          %v640 = vld [vmem:[%s4 + $0x18] sm:$0xff]
          %v641 = vld [vmem:[%s5] sm:$0x1]
          %v643 = vlaneseq
          %v644 = vshrl.u32 %v643, 7
          %v645 = vsub.s32 0, %v644
          %v646 = vrot.slane %v641, %v645
          %v649 = vsel %vm589, %v635, 0
          %v652 = vsel %vm589, %v636, 0
          %654 = vmatprep.subr.mxu0 0.0
          %655 = vmatpush1.msra.mxu0 %v637
          %656 = vmatprep.subr.mxu0 0.0
          %657 = vmatpush1.msra.mxu0 %v638
          %658 = vmatprep.subr.mxu0 0.0
          %659 = vmatpush1.msra.mxu0 %v639
          %660 = vmatprep.subr.mxu0 0.0
          %661 = vmatpush1.msra.mxu0 %v640
          %662 = vmatprep.subr.mxu0 0.0
          %663 = vmatpush1.msra.mxu0 0.0
          %664 = vmatprep.subr.mxu0 0.0
          %665 = vmatpush1.msra.mxu0 0.0
          %666 = vmatprep.subr.mxu0 0.0
          %667 = vmatpush1.msra.mxu0 0.0
          %668 = vmatprep.subr.mxu0 0.0
          %669 = vmatpush1.msra.mxu0 0.0
          %670 = vmatprep.subr.mxu0 0.0
          %671 = vmatpush1.msra.mxu0 0.0
          %672 = vmatprep.subr.mxu0 0.0
          %673 = vmatpush1.msra.mxu0 0.0
          %674 = vmatprep.subr.mxu0 0.0
          %675 = vmatpush1.msra.mxu0 0.0
          %676 = vmatprep.subr.mxu0 0.0
          %677 = vmatpush1.msra.mxu0 0.0
          %678 = vmatprep.subr.mxu0 0.0
          %679 = vmatpush1.msra.mxu0 0.0
          %680 = vmatprep.subr.mxu0 0.0
          %681 = vmatpush1.msra.mxu0 0.0
          %682 = vmatprep.subr.mxu0 0.0
          %683 = vmatpush1.msra.mxu0 0.0
          %684 = vmatprep.subr.mxu0 0.0
          %685 = vmatpush1.msra.mxu0 0.0
          %686 = vmatprep.subr.mxu0 0.0
          %687 = vmatpush1.msra.mxu0 0.0
          %688 = vmatprep.subr.mxu0 0.0
          %689 = vmatpush1.msra.mxu0 0.0
          %690 = vmatprep.subr.mxu0 0.0
          %691 = vmatpush1.msra.mxu0 0.0
          %692 = vmatprep.subr.mxu0 0.0
          %693 = vmatpush1.msra.mxu0 0.0
          %694 = vmatprep.subr.mxu0 0.0
          %695 = vmatpush1.msra.mxu0 0.0
          %696 = vmatprep.subr.mxu0 0.0
          %697 = vmatpush1.msra.mxu0 0.0
          %698 = vmatprep.subr.mxu0 0.0
          %699 = vmatpush1.msra.mxu0 0.0
          %700 = vmatprep.subr.mxu0 0.0
          %701 = vmatpush1.msra.mxu0 0.0
          %702 = vmatprep.subr.mxu0 0.0
          %703 = vmatpush1.msra.mxu0 0.0
          %704 = vmatprep.subr.mxu0 0.0
          %705 = vmatpush1.msra.mxu0 0.0
          %706 = vmatprep.subr.mxu0 0.0
          %707 = vmatpush1.msra.mxu0 0.0
          %708 = vmatprep.subr.mxu0 0.0
          %709 = vmatpush1.msra.mxu0 0.0
          %710 = vmatprep.subr.mxu0 0.0
          %711 = vmatpush1.msra.mxu0 0.0
          %712 = vmatprep.subr.mxu0 0.0
          %713 = vmatpush1.msra.mxu0 0.0
          %714 = vmatprep.subr.mxu0 0.0
          %715 = vmatpush1.msra.mxu0 0.0
          %716 = vmatprep.subr.mxu0 0.0
          %717 = vmatpush1.msra.mxu0 0.0
          %718 = vmatprep.mubr.f32.mxu0 0.0
          %719 = vmatmul.mubr.f32.gmra.mrb[0].mxu0 %v649
          %v720 = vpop.f32.mrb[0].mxu0
          %v721 = vadd.f32 %v646, %v720
          %v722 = vpop.f32.mrb[0].mxu0
          %723 = vmatprep.mubr.f32.mxu0 0.0
          %724 = vmatmul.mubr.f32.gmra.mrb[0].mxu0 %v652
          %v725 = vpop.f32.mrb[0].mxu0
          %v726 = vadd.f32 %v646, %v725
          %v727 = vpop.f32.mrb[0].mxu0
          %728 = vdwg.mxu0
          %729 = vst.msk [vmem:[#allocation2] sm:$0xff] %vm589, %v721
          %730 = vst.msk [vmem:[#allocation2 + $0x8] sm:$0xff] %vm589, %v726
          %v731 = vld [vmem:[#allocation5] sm:$0xff]
          %v732 = vld [vmem:[#allocation5 + $0x8] sm:$0xff]
          %v733 = vld [vmem:[#allocation5 + $0x10] sm:$0xff]
          %v734 = vld [vmem:[#allocation5 + $0x18] sm:$0xff]
          %v735 = vld [vmem:[%s7] sm:$0x1]
          %v737 = vlaneseq
          %v738 = vshrl.u32 %v737, 7
          %v739 = vsub.s32 0, %v738
          %v740 = vrot.slane %v735, %v739
          %742 = vmatprep.subr.mxu0 0.0
          %743 = vmatpush1.msra.mxu0 %v731
          %744 = vmatprep.subr.mxu0 0.0
          %745 = vmatpush1.msra.mxu0 %v732
          %746 = vmatprep.subr.mxu0 0.0
          %747 = vmatpush1.msra.mxu0 %v733
          %748 = vmatprep.subr.mxu0 0.0
          %749 = vmatpush1.msra.mxu0 %v734
          %750 = vmatprep.subr.mxu0 0.0
          %751 = vmatpush1.msra.mxu0 0.0
          %752 = vmatprep.subr.mxu0 0.0
          %753 = vmatpush1.msra.mxu0 0.0
          %754 = vmatprep.subr.mxu0 0.0
          %755 = vmatpush1.msra.mxu0 0.0
          %756 = vmatprep.subr.mxu0 0.0
          %757 = vmatpush1.msra.mxu0 0.0
          %758 = vmatprep.subr.mxu0 0.0
          %759 = vmatpush1.msra.mxu0 0.0
          %760 = vmatprep.subr.mxu0 0.0
          %761 = vmatpush1.msra.mxu0 0.0
          %762 = vmatprep.subr.mxu0 0.0
          %763 = vmatpush1.msra.mxu0 0.0
          %764 = vmatprep.subr.mxu0 0.0
          %765 = vmatpush1.msra.mxu0 0.0
          %766 = vmatprep.subr.mxu0 0.0
          %767 = vmatpush1.msra.mxu0 0.0
          %768 = vmatprep.subr.mxu0 0.0
          %769 = vmatpush1.msra.mxu0 0.0
          %770 = vmatprep.subr.mxu0 0.0
          %771 = vmatpush1.msra.mxu0 0.0
          %772 = vmatprep.subr.mxu0 0.0
          %773 = vmatpush1.msra.mxu0 0.0
          %774 = vmatprep.subr.mxu0 0.0
          %775 = vmatpush1.msra.mxu0 0.0
          %776 = vmatprep.subr.mxu0 0.0
          %777 = vmatpush1.msra.mxu0 0.0
          %778 = vmatprep.subr.mxu0 0.0
          %779 = vmatpush1.msra.mxu0 0.0
          %780 = vmatprep.subr.mxu0 0.0
          %781 = vmatpush1.msra.mxu0 0.0
          %782 = vmatprep.subr.mxu0 0.0
          %783 = vmatpush1.msra.mxu0 0.0
          %784 = vmatprep.subr.mxu0 0.0
          %785 = vmatpush1.msra.mxu0 0.0
          %786 = vmatprep.subr.mxu0 0.0
          %787 = vmatpush1.msra.mxu0 0.0
          %788 = vmatprep.subr.mxu0 0.0
          %789 = vmatpush1.msra.mxu0 0.0
          %790 = vmatprep.subr.mxu0 0.0
          %791 = vmatpush1.msra.mxu0 0.0
          %792 = vmatprep.subr.mxu0 0.0
          %793 = vmatpush1.msra.mxu0 0.0
          %794 = vmatprep.subr.mxu0 0.0
          %795 = vmatpush1.msra.mxu0 0.0
          %796 = vmatprep.subr.mxu0 0.0
          %797 = vmatpush1.msra.mxu0 0.0
          %798 = vmatprep.subr.mxu0 0.0
          %799 = vmatpush1.msra.mxu0 0.0
          %800 = vmatprep.subr.mxu0 0.0
          %801 = vmatpush1.msra.mxu0 0.0
          %802 = vmatprep.subr.mxu0 0.0
          %803 = vmatpush1.msra.mxu0 0.0
          %804 = vmatprep.subr.mxu0 0.0
          %805 = vmatpush1.msra.mxu0 0.0
          %806 = vmatprep.mubr.f32.mxu0 0.0
          %807 = vmatmul.mubr.f32.gmra.mrb[0].mxu0 %v649
          %v808 = vpop.f32.mrb[0].mxu0
          %v809 = vadd.f32 %v740, %v808
          %v810 = vpop.f32.mrb[0].mxu0
          %811 = vmatprep.mubr.f32.mxu0 0.0
          %812 = vmatmul.mubr.f32.gmra.mrb[0].mxu0 %v652
          %v813 = vpop.f32.mrb[0].mxu0
          %v814 = vadd.f32 %v740, %v813
          %v815 = vpop.f32.mrb[0].mxu0
          %816 = vdwg.mxu0
          %817 = vst.msk [vmem:[#allocation3] sm:$0xff] %vm589, %v809
          %818 = vst.msk [vmem:[#allocation3 + $0x8] sm:$0xff] %vm589, %v814
        $region100: #{tpu_custom_call.1} parent=79 // pred_fallthru
          _
        %s819 = smul.u32 %s37, 8
        %s820 = scalar_lea.vmem %s575, %s819
        %v821 = vld [vmem:[%s820] sm:$0xff]
        %vm822 = vcmask 261120
        %v823 = vsel %vm822, %v821, 0.0
        %824 = vadd.xlane.f32.xlu0 %v823
        %v825 = vpop.xlane.xlu0 %824
        %v826 = vrcp.pop 32.0
        %v827 = vmul.f32 %v825, %v826
        %v828 = vsub.f32 %v821, %v827
        %v829 = vmul.f32 %v828, %v828
        %v830 = vsel %vm822, %v829, 0.0
        %831 = vadd.xlane.f32.xlu0 %v830
        %v832 = vpop.xlane.xlu0 %831
        %v833 = vmul.f32 %v832, 0.032258064
        %v834 = vrsqrt.pop %v833
        %v835 = vmul.f32 %v833, %v834
        %vm836 = vcmp.eq.f32.partialorder %v833, inf
        %v837 = vsel %vm836, %v833, %v835
        %vm838 = vcmp.eq.f32.partialorder %v833, 0.0
        %v839 = vand.u32 %v833, 2147483648
        %v840 = vsel %vm838, %v839, %v837
        %v841 = vadd.f32 %v840, 1e-06
        %v842 = vrcp.pop %v841
        %v843 = vstv %s579
        %v844 = vmul.f32 %v843, %v828
        %v845 = vmul.f32 %v844, %v842
        %v846 = vstv %s580
        %v847 = vadd.f32 %v845, %v846
        %v848 = vld [vmem:[%s2] sm:$0xff]
        %v849 = vld [vmem:[%s2 + $0x8] sm:$0xff]
        %v850 = vld [vmem:[%s2 + $0x10] sm:$0xff]
        %v851 = vld [vmem:[%s2 + $0x18] sm:$0xff]
        %v852 = vld [vmem:[%s3] sm:$0x1]
        %v854 = vlaneseq
        %v855 = vshrl.u32 %v854, 7
        %v856 = vsub.s32 0, %v855
        %v857 = vrot.slane %v852, %v856
        %v860 = vsel %vm822, %v847, 0
        %862 = vmatprep.subr.mxu0 0.0
        %863 = vmatpush1.msra.mxu0 %v848
        %864 = vmatprep.subr.mxu0 0.0
        %865 = vmatpush1.msra.mxu0 %v849
        %866 = vmatprep.subr.mxu0 0.0
        %867 = vmatpush1.msra.mxu0 %v850
        %868 = vmatprep.subr.mxu0 0.0
        %869 = vmatpush1.msra.mxu0 %v851
        %870 = vmatprep.subr.mxu0 0.0
        %871 = vmatpush1.msra.mxu0 0.0
        %872 = vmatprep.subr.mxu0 0.0
        %873 = vmatpush1.msra.mxu0 0.0
        %874 = vmatprep.subr.mxu0 0.0
        %875 = vmatpush1.msra.mxu0 0.0
        %876 = vmatprep.subr.mxu0 0.0
        %877 = vmatpush1.msra.mxu0 0.0
        %878 = vmatprep.subr.mxu0 0.0
        %879 = vmatpush1.msra.mxu0 0.0
        %880 = vmatprep.subr.mxu0 0.0
        %881 = vmatpush1.msra.mxu0 0.0
        %882 = vmatprep.subr.mxu0 0.0
        %883 = vmatpush1.msra.mxu0 0.0
        %884 = vmatprep.subr.mxu0 0.0
        %885 = vmatpush1.msra.mxu0 0.0
        %886 = vmatprep.subr.mxu0 0.0
        %887 = vmatpush1.msra.mxu0 0.0
        %888 = vmatprep.subr.mxu0 0.0
        %889 = vmatpush1.msra.mxu0 0.0
        %890 = vmatprep.subr.mxu0 0.0
        %891 = vmatpush1.msra.mxu0 0.0
        %892 = vmatprep.subr.mxu0 0.0
        %893 = vmatpush1.msra.mxu0 0.0
        %894 = vmatprep.subr.mxu0 0.0
        %895 = vmatpush1.msra.mxu0 0.0
        %896 = vmatprep.subr.mxu0 0.0
        %897 = vmatpush1.msra.mxu0 0.0
        %898 = vmatprep.subr.mxu0 0.0
        %899 = vmatpush1.msra.mxu0 0.0
        %900 = vmatprep.subr.mxu0 0.0
        %901 = vmatpush1.msra.mxu0 0.0
        %902 = vmatprep.subr.mxu0 0.0
        %903 = vmatpush1.msra.mxu0 0.0
        %904 = vmatprep.subr.mxu0 0.0
        %905 = vmatpush1.msra.mxu0 0.0
        %906 = vmatprep.subr.mxu0 0.0
        %907 = vmatpush1.msra.mxu0 0.0
        %908 = vmatprep.subr.mxu0 0.0
        %909 = vmatpush1.msra.mxu0 0.0
        %910 = vmatprep.subr.mxu0 0.0
        %911 = vmatpush1.msra.mxu0 0.0
        %912 = vmatprep.subr.mxu0 0.0
        %913 = vmatpush1.msra.mxu0 0.0
        %914 = vmatprep.subr.mxu0 0.0
        %915 = vmatpush1.msra.mxu0 0.0
        %916 = vmatprep.subr.mxu0 0.0
        %917 = vmatpush1.msra.mxu0 0.0
        %918 = vmatprep.subr.mxu0 0.0
        %919 = vmatpush1.msra.mxu0 0.0
        %920 = vmatprep.subr.mxu0 0.0
        %921 = vmatpush1.msra.mxu0 0.0
        %922 = vmatprep.subr.mxu0 0.0
        %923 = vmatpush1.msra.mxu0 0.0
        %924 = vmatprep.subr.mxu0 0.0
        %925 = vmatpush1.msra.mxu0 0.0
        %926 = vmatprep.mubr.f32.mxu0 0.0
        %927 = vmatmul.mubr.f32.gmra.mrb[0].mxu0 %v860
        %v928 = vpop.f32.mrb[0].mxu0
        %v929 = vadd.f32 %v857, %v928
        %v930 = vpop.f32.mrb[0].mxu0
        %931 = vdwg.mxu0
        %v932 = vmul.f32 %v929, 0.35355338
        %v933 = vld [vmem:[%s578] sm:$0x1]
        %vm934 = vcmp.eq.f32.partialorder %v933, 0.0
        %v935 = vsel %vm934, -1e+09, 0.0
        %v936 = vld [vmem:[#allocation2] sm:$0xff]
        %v937 = vld [vmem:[#allocation2 + $0x8] sm:$0xff]
        %v938 = vld [vmem:[#allocation3] sm:$0xff]
        %v939 = vld [vmem:[#allocation3 + $0x8] sm:$0xff]
        %v941 = vlaneseq
        %v942 = vshrl.u32 %v941, 7
        %v943 = vsub.s32 0, %v942
        %v944 = vrot.slane %v935, %v943
        %vm946 = vcmask 64512
        %v948 = vsel %vm946, %v932, 0
        %v951 = vsel %vm946, %v936, 0
        %v954 = vsel %vm946, %v937, 0
        %956 = vmatprep.subr.mxu0 0.0
        %957 = vmatpush1.xpose.msra.mxu0 %v951
        %958 = vmatprep.subr.mxu0 0.0
        %959 = vmatpush1.xpose.msra.mxu0 %v954
        %960 = vmatprep.subr.mxu0 0.0
        %961 = vmatpush1.xpose.msra.mxu0 0.0
        %962 = vmatprep.subr.mxu0 0.0
        %963 = vmatpush1.xpose.msra.mxu0 0.0
        %964 = vmatprep.subr.mxu0 0.0
        %965 = vmatpush1.xpose.msra.mxu0 0.0
        %966 = vmatprep.subr.mxu0 0.0
        %967 = vmatpush1.xpose.msra.mxu0 0.0
        %968 = vmatprep.subr.mxu0 0.0
        %969 = vmatpush1.xpose.msra.mxu0 0.0
        %970 = vmatprep.subr.mxu0 0.0
        %971 = vmatpush1.xpose.msra.mxu0 0.0
        %972 = vmatprep.subr.mxu0 0.0
        %973 = vmatpush1.xpose.msra.mxu0 0.0
        %974 = vmatprep.subr.mxu0 0.0
        %975 = vmatpush1.xpose.msra.mxu0 0.0
        %976 = vmatprep.subr.mxu0 0.0
        %977 = vmatpush1.xpose.msra.mxu0 0.0
        %978 = vmatprep.subr.mxu0 0.0
        %979 = vmatpush1.xpose.msra.mxu0 0.0
        %980 = vmatprep.subr.mxu0 0.0
        %981 = vmatpush1.xpose.msra.mxu0 0.0
        %982 = vmatprep.subr.mxu0 0.0
        %983 = vmatpush1.xpose.msra.mxu0 0.0
        %984 = vmatprep.subr.mxu0 0.0
        %985 = vmatpush1.xpose.msra.mxu0 0.0
        %986 = vmatprep.subr.mxu0 0.0
        %987 = vmatpush1.xpose.msra.mxu0 0.0
        %988 = vmatprep.subr.mxu0 0.0
        %989 = vmatpush1.xpose.msra.mxu0 0.0
        %990 = vmatprep.subr.mxu0 0.0
        %991 = vmatpush1.xpose.msra.mxu0 0.0
        %992 = vmatprep.subr.mxu0 0.0
        %993 = vmatpush1.xpose.msra.mxu0 0.0
        %994 = vmatprep.subr.mxu0 0.0
        %995 = vmatpush1.xpose.msra.mxu0 0.0
        %996 = vmatprep.subr.mxu0 0.0
        %997 = vmatpush1.xpose.msra.mxu0 0.0
        %998 = vmatprep.subr.mxu0 0.0
        %999 = vmatpush1.xpose.msra.mxu0 0.0
        %1000 = vmatprep.subr.mxu0 0.0
        %1001 = vmatpush1.xpose.msra.mxu0 0.0
        %1002 = vmatprep.subr.mxu0 0.0
        %1003 = vmatpush1.xpose.msra.mxu0 0.0
        %1004 = vmatprep.subr.mxu0 0.0
        %1005 = vmatpush1.xpose.msra.mxu0 0.0
        %1006 = vmatprep.subr.mxu0 0.0
        %1007 = vmatpush1.xpose.msra.mxu0 0.0
        %1008 = vmatprep.subr.mxu0 0.0
        %1009 = vmatpush1.xpose.msra.mxu0 0.0
        %1010 = vmatprep.subr.mxu0 0.0
        %1011 = vmatpush1.xpose.msra.mxu0 0.0
        %1012 = vmatprep.subr.mxu0 0.0
        %1013 = vmatpush1.xpose.msra.mxu0 0.0
        %1014 = vmatprep.subr.mxu0 0.0
        %1015 = vmatpush1.xpose.msra.mxu0 0.0
        %1016 = vmatprep.subr.mxu0 0.0
        %1017 = vmatpush1.xpose.msra.mxu0 0.0
        %1018 = vmatprep.subr.mxu0 0.0
        %1019 = vmatpush1.xpose.msra.mxu0 0.0
        %1020 = vmatprep.mubr.f32.mxu0 0.0
        %1021 = vmatmul.mubr.f32.gmra.mrb[0].mxu0 %v948
        %v1022 = vpop.f32.mrb[0].mxu0
        %v1023 = vadd.f32 %v944, %v1022
        %v1024 = vpop.f32.mrb[0].mxu0
        %1025 = vdwg.mxu0
        %vm1026 = vcmask 130048
        %v1027 = vsel %vm1026, %v1023, -inf
        %1028 = vmax.xlane.f32.xlu0 %v1027
        %v1029 = vpop.xlane.xlu0 %1028
        %v1030 = vsub.f32 %v1023, %v1029
        %v1031 = vmul.f32 %v1030, 1.442695
        %v1032 = vpow.pop %v1031
        %v1033 = vsel %vm1026, %v1032, 0.0
        %1034 = vadd.xlane.f32.xlu0 %v1033
        %v1035 = vpop.xlane.xlu0 %1034
        %v1036 = vrcp.pop %v1035
        %v1037 = vmul.f32 %v1032, %v1036
        %v1039 = vsel %vm1026, %v1037, 0
        %1041 = vmatprep.subr.mxu0 0.0
        %1042 = vmatpush1.msra.mxu0 %v938
        %1043 = vmatprep.subr.mxu0 0.0
        %1044 = vmatpush1.msra.mxu0 %v939
        %1045 = vmatprep.subr.mxu0 0.0
        %1046 = vmatpush1.msra.mxu0 0.0
        %1047 = vmatprep.subr.mxu0 0.0
        %1048 = vmatpush1.msra.mxu0 0.0
        %1049 = vmatprep.subr.mxu0 0.0
        %1050 = vmatpush1.msra.mxu0 0.0
        %1051 = vmatprep.subr.mxu0 0.0
        %1052 = vmatpush1.msra.mxu0 0.0
        %1053 = vmatprep.subr.mxu0 0.0
        %1054 = vmatpush1.msra.mxu0 0.0
        %1055 = vmatprep.subr.mxu0 0.0
        %1056 = vmatpush1.msra.mxu0 0.0
        %1057 = vmatprep.subr.mxu0 0.0
        %1058 = vmatpush1.msra.mxu0 0.0
        %1059 = vmatprep.subr.mxu0 0.0
        %1060 = vmatpush1.msra.mxu0 0.0
        %1061 = vmatprep.subr.mxu0 0.0
        %1062 = vmatpush1.msra.mxu0 0.0
        %1063 = vmatprep.subr.mxu0 0.0
        %1064 = vmatpush1.msra.mxu0 0.0
        %1065 = vmatprep.subr.mxu0 0.0
        %1066 = vmatpush1.msra.mxu0 0.0
        %1067 = vmatprep.subr.mxu0 0.0
        %1068 = vmatpush1.msra.mxu0 0.0
        %1069 = vmatprep.subr.mxu0 0.0
        %1070 = vmatpush1.msra.mxu0 0.0
        %1071 = vmatprep.subr.mxu0 0.0
        %1072 = vmatpush1.msra.mxu0 0.0
        %1073 = vmatprep.subr.mxu0 0.0
        %1074 = vmatpush1.msra.mxu0 0.0
        %1075 = vmatprep.subr.mxu0 0.0
        %1076 = vmatpush1.msra.mxu0 0.0
        %1077 = vmatprep.subr.mxu0 0.0
        %1078 = vmatpush1.msra.mxu0 0.0
        %1079 = vmatprep.subr.mxu0 0.0
        %1080 = vmatpush1.msra.mxu0 0.0
        %1081 = vmatprep.subr.mxu0 0.0
        %1082 = vmatpush1.msra.mxu0 0.0
        %1083 = vmatprep.subr.mxu0 0.0
        %1084 = vmatpush1.msra.mxu0 0.0
        %1085 = vmatprep.subr.mxu0 0.0
        %1086 = vmatpush1.msra.mxu0 0.0
        %1087 = vmatprep.subr.mxu0 0.0
        %1088 = vmatpush1.msra.mxu0 0.0
        %1089 = vmatprep.subr.mxu0 0.0
        %1090 = vmatpush1.msra.mxu0 0.0
        %1091 = vmatprep.subr.mxu0 0.0
        %1092 = vmatpush1.msra.mxu0 0.0
        %1093 = vmatprep.subr.mxu0 0.0
        %1094 = vmatpush1.msra.mxu0 0.0
        %1095 = vmatprep.subr.mxu0 0.0
        %1096 = vmatpush1.msra.mxu0 0.0
        %1097 = vmatprep.subr.mxu0 0.0
        %1098 = vmatpush1.msra.mxu0 0.0
        %1099 = vmatprep.subr.mxu0 0.0
        %1100 = vmatpush1.msra.mxu0 0.0
        %1101 = vmatprep.subr.mxu0 0.0
        %1102 = vmatpush1.msra.mxu0 0.0
        %1103 = vmatprep.subr.mxu0 0.0
        %1104 = vmatpush1.msra.mxu0 0.0
        %1105 = vmatprep.mubr.f32.mxu0 0.0
        %1106 = vmatmul.mubr.f32.gmra.mrb[0].mxu0 %v1039
        %v1107 = vpop.f32.mrb[0].mxu0
        %v1108 = vadd.f32 0.0, %v1107
        %v1109 = vpop.f32.mrb[0].mxu0
        %1110 = vdwg.mxu0
        %1111 = vst.msk [vmem:[#allocation4] sm:$0xff] %vm946, %v1108
        %1112 = vrot.lane.b32.xlu0 %v932, 120
        %v1113 = vpop.permute.xlu0 %1112
        %1114 = vrot.lane.b32.xlu0 %v936, 120
        %v1115 = vpop.permute.xlu0 %1114
        %1116 = vrot.lane.b32.xlu0 %v937, 120
        %v1117 = vpop.permute.xlu0 %1116
        %v1118 = vsel %vm946, %v1113, 0
        %v1120 = vsel %vm946, %v1115, 0
        %v1122 = vsel %vm946, %v1117, 0
        %1124 = vmatprep.subr.mxu0 0.0
        %1125 = vmatpush1.xpose.msra.mxu0 %v1120
        %1126 = vmatprep.subr.mxu0 0.0
        %1127 = vmatpush1.xpose.msra.mxu0 %v1122
        %1128 = vmatprep.subr.mxu0 0.0
        %1129 = vmatpush1.xpose.msra.mxu0 0.0
        %1130 = vmatprep.subr.mxu0 0.0
        %1131 = vmatpush1.xpose.msra.mxu0 0.0
        %1132 = vmatprep.subr.mxu0 0.0
        %1133 = vmatpush1.xpose.msra.mxu0 0.0
        %1134 = vmatprep.subr.mxu0 0.0
        %1135 = vmatpush1.xpose.msra.mxu0 0.0
        %1136 = vmatprep.subr.mxu0 0.0
        %1137 = vmatpush1.xpose.msra.mxu0 0.0
        %1138 = vmatprep.subr.mxu0 0.0
        %1139 = vmatpush1.xpose.msra.mxu0 0.0
        %1140 = vmatprep.subr.mxu0 0.0
        %1141 = vmatpush1.xpose.msra.mxu0 0.0
        %1142 = vmatprep.subr.mxu0 0.0
        %1143 = vmatpush1.xpose.msra.mxu0 0.0
        %1144 = vmatprep.subr.mxu0 0.0
        %1145 = vmatpush1.xpose.msra.mxu0 0.0
        %1146 = vmatprep.subr.mxu0 0.0
        %1147 = vmatpush1.xpose.msra.mxu0 0.0
        %1148 = vmatprep.subr.mxu0 0.0
        %1149 = vmatpush1.xpose.msra.mxu0 0.0
        %1150 = vmatprep.subr.mxu0 0.0
        %1151 = vmatpush1.xpose.msra.mxu0 0.0
        %1152 = vmatprep.subr.mxu0 0.0
        %1153 = vmatpush1.xpose.msra.mxu0 0.0
        %1154 = vmatprep.subr.mxu0 0.0
        %1155 = vmatpush1.xpose.msra.mxu0 0.0
        %1156 = vmatprep.subr.mxu0 0.0
        %1157 = vmatpush1.xpose.msra.mxu0 0.0
        %1158 = vmatprep.subr.mxu0 0.0
        %1159 = vmatpush1.xpose.msra.mxu0 0.0
        %1160 = vmatprep.subr.mxu0 0.0
        %1161 = vmatpush1.xpose.msra.mxu0 0.0
        %1162 = vmatprep.subr.mxu0 0.0
        %1163 = vmatpush1.xpose.msra.mxu0 0.0
        %1164 = vmatprep.subr.mxu0 0.0
        %1165 = vmatpush1.xpose.msra.mxu0 0.0
        %1166 = vmatprep.subr.mxu0 0.0
        %1167 = vmatpush1.xpose.msra.mxu0 0.0
        %1168 = vmatprep.subr.mxu0 0.0
        %1169 = vmatpush1.xpose.msra.mxu0 0.0
        %1170 = vmatprep.subr.mxu0 0.0
        %1171 = vmatpush1.xpose.msra.mxu0 0.0
        %1172 = vmatprep.subr.mxu0 0.0
        %1173 = vmatpush1.xpose.msra.mxu0 0.0
        %1174 = vmatprep.subr.mxu0 0.0
        %1175 = vmatpush1.xpose.msra.mxu0 0.0
        %1176 = vmatprep.subr.mxu0 0.0
        %1177 = vmatpush1.xpose.msra.mxu0 0.0
        %1178 = vmatprep.subr.mxu0 0.0
        %1179 = vmatpush1.xpose.msra.mxu0 0.0
        %1180 = vmatprep.subr.mxu0 0.0
        %1181 = vmatpush1.xpose.msra.mxu0 0.0
        %1182 = vmatprep.subr.mxu0 0.0
        %1183 = vmatpush1.xpose.msra.mxu0 0.0
        %1184 = vmatprep.subr.mxu0 0.0
        %1185 = vmatpush1.xpose.msra.mxu0 0.0
        %1186 = vmatprep.subr.mxu0 0.0
        %1187 = vmatpush1.xpose.msra.mxu0 0.0
        %1188 = vmatprep.mubr.f32.mxu0 0.0
        %1189 = vmatmul.mubr.f32.gmra.mrb[0].mxu0 %v1118
        %v1190 = vpop.f32.mrb[0].mxu0
        %v1191 = vadd.f32 %v944, %v1190
        %v1192 = vpop.f32.mrb[0].mxu0
        %1193 = vdwg.mxu0
        %v1194 = vsel %vm1026, %v1191, -inf
        %1195 = vmax.xlane.f32.xlu0 %v1194
        %v1196 = vpop.xlane.xlu0 %1195
        %v1197 = vsub.f32 %v1191, %v1196
        %v1198 = vmul.f32 %v1197, 1.442695
        %v1199 = vpow.pop %v1198
        %v1200 = vsel %vm1026, %v1199, 0.0
        %1201 = vadd.xlane.f32.xlu0 %v1200
        %v1202 = vpop.xlane.xlu0 %1201
        %v1203 = vrcp.pop %v1202
        %v1204 = vmul.f32 %v1199, %v1203
        %1207 = vrot.lane.b32.xlu0 %v938, 120
        %v1208 = vpop.permute.xlu0 %1207
        %1209 = vrot.lane.b32.xlu0 %v939, 120
        %v1210 = vpop.permute.xlu0 %1209
        %v1214 = vsel %vm1026, %v1204, 0
        %1216 = vmatprep.subr.mxu0 0.0
        %1217 = vmatpush1.msra.mxu0 %v1208
        %1218 = vmatprep.subr.mxu0 0.0
        %1219 = vmatpush1.msra.mxu0 %v1210
        %1220 = vmatprep.subr.mxu0 0.0
        %1221 = vmatpush1.msra.mxu0 0.0
        %1222 = vmatprep.subr.mxu0 0.0
        %1223 = vmatpush1.msra.mxu0 0.0
        %1224 = vmatprep.subr.mxu0 0.0
        %1225 = vmatpush1.msra.mxu0 0.0
        %1226 = vmatprep.subr.mxu0 0.0
        %1227 = vmatpush1.msra.mxu0 0.0
        %1228 = vmatprep.subr.mxu0 0.0
        %1229 = vmatpush1.msra.mxu0 0.0
        %1230 = vmatprep.subr.mxu0 0.0
        %1231 = vmatpush1.msra.mxu0 0.0
        %1232 = vmatprep.subr.mxu0 0.0
        %1233 = vmatpush1.msra.mxu0 0.0
        %1234 = vmatprep.subr.mxu0 0.0
        %1235 = vmatpush1.msra.mxu0 0.0
        %1236 = vmatprep.subr.mxu0 0.0
        %1237 = vmatpush1.msra.mxu0 0.0
        %1238 = vmatprep.subr.mxu0 0.0
        %1239 = vmatpush1.msra.mxu0 0.0
        %1240 = vmatprep.subr.mxu0 0.0
        %1241 = vmatpush1.msra.mxu0 0.0
        %1242 = vmatprep.subr.mxu0 0.0
        %1243 = vmatpush1.msra.mxu0 0.0
        %1244 = vmatprep.subr.mxu0 0.0
        %1245 = vmatpush1.msra.mxu0 0.0
        %1246 = vmatprep.subr.mxu0 0.0
        %1247 = vmatpush1.msra.mxu0 0.0
        %1248 = vmatprep.subr.mxu0 0.0
        %1249 = vmatpush1.msra.mxu0 0.0
        %1250 = vmatprep.subr.mxu0 0.0
        %1251 = vmatpush1.msra.mxu0 0.0
        %1252 = vmatprep.subr.mxu0 0.0
        %1253 = vmatpush1.msra.mxu0 0.0
        %1254 = vmatprep.subr.mxu0 0.0
        %1255 = vmatpush1.msra.mxu0 0.0
        %1256 = vmatprep.subr.mxu0 0.0
        %1257 = vmatpush1.msra.mxu0 0.0
        %1258 = vmatprep.subr.mxu0 0.0
        %1259 = vmatpush1.msra.mxu0 0.0
        %1260 = vmatprep.subr.mxu0 0.0
        %1261 = vmatpush1.msra.mxu0 0.0
        %1262 = vmatprep.subr.mxu0 0.0
        %1263 = vmatpush1.msra.mxu0 0.0
        %1264 = vmatprep.subr.mxu0 0.0
        %1265 = vmatpush1.msra.mxu0 0.0
        %1266 = vmatprep.subr.mxu0 0.0
        %1267 = vmatpush1.msra.mxu0 0.0
        %1268 = vmatprep.subr.mxu0 0.0
        %1269 = vmatpush1.msra.mxu0 0.0
        %1270 = vmatprep.subr.mxu0 0.0
        %1271 = vmatpush1.msra.mxu0 0.0
        %1272 = vmatprep.subr.mxu0 0.0
        %1273 = vmatpush1.msra.mxu0 0.0
        %1274 = vmatprep.subr.mxu0 0.0
        %1275 = vmatpush1.msra.mxu0 0.0
        %1276 = vmatprep.subr.mxu0 0.0
        %1277 = vmatpush1.msra.mxu0 0.0
        %1278 = vmatprep.subr.mxu0 0.0
        %1279 = vmatpush1.msra.mxu0 0.0
        %1280 = vmatprep.mubr.f32.mxu0 0.0
        %1281 = vmatmul.mubr.f32.gmra.mrb[0].mxu0 %v1214
        %v1282 = vpop.f32.mrb[0].mxu0
        %v1283 = vadd.f32 0.0, %v1282
        %v1284 = vpop.f32.mrb[0].mxu0
        %1285 = vdwg.mxu0
        %1287 = vrot.lane.b32.xlu0 %v1283, 8
        %v1288 = vpop.permute.xlu0 %1287
        %vm1290 = vcmask 130112
        %1291 = vst.msk [vmem:[#allocation4] sm:$0xff] %vm1290, %v1288
        %1292 = vrot.lane.b32.xlu0 %v932, 112
        %v1293 = vpop.permute.xlu0 %1292
        %1294 = vrot.lane.b32.xlu0 %v936, 112
        %v1295 = vpop.permute.xlu0 %1294
        %1296 = vrot.lane.b32.xlu0 %v937, 112
        %v1297 = vpop.permute.xlu0 %1296
        %v1298 = vsel %vm946, %v1293, 0
        %v1300 = vsel %vm946, %v1295, 0
        %v1302 = vsel %vm946, %v1297, 0
        %1304 = vmatprep.subr.mxu0 0.0
        %1305 = vmatpush1.xpose.msra.mxu0 %v1300
        %1306 = vmatprep.subr.mxu0 0.0
        %1307 = vmatpush1.xpose.msra.mxu0 %v1302
        %1308 = vmatprep.subr.mxu0 0.0
        %1309 = vmatpush1.xpose.msra.mxu0 0.0
        %1310 = vmatprep.subr.mxu0 0.0
        %1311 = vmatpush1.xpose.msra.mxu0 0.0
        %1312 = vmatprep.subr.mxu0 0.0
        %1313 = vmatpush1.xpose.msra.mxu0 0.0
        %1314 = vmatprep.subr.mxu0 0.0
        %1315 = vmatpush1.xpose.msra.mxu0 0.0
        %1316 = vmatprep.subr.mxu0 0.0
        %1317 = vmatpush1.xpose.msra.mxu0 0.0
        %1318 = vmatprep.subr.mxu0 0.0
        %1319 = vmatpush1.xpose.msra.mxu0 0.0
        %1320 = vmatprep.subr.mxu0 0.0
        %1321 = vmatpush1.xpose.msra.mxu0 0.0
        %1322 = vmatprep.subr.mxu0 0.0
        %1323 = vmatpush1.xpose.msra.mxu0 0.0
        %1324 = vmatprep.subr.mxu0 0.0
        %1325 = vmatpush1.xpose.msra.mxu0 0.0
        %1326 = vmatprep.subr.mxu0 0.0
        %1327 = vmatpush1.xpose.msra.mxu0 0.0
        %1328 = vmatprep.subr.mxu0 0.0
        %1329 = vmatpush1.xpose.msra.mxu0 0.0
        %1330 = vmatprep.subr.mxu0 0.0
        %1331 = vmatpush1.xpose.msra.mxu0 0.0
        %1332 = vmatprep.subr.mxu0 0.0
        %1333 = vmatpush1.xpose.msra.mxu0 0.0
        %1334 = vmatprep.subr.mxu0 0.0
        %1335 = vmatpush1.xpose.msra.mxu0 0.0
        %1336 = vmatprep.subr.mxu0 0.0
        %1337 = vmatpush1.xpose.msra.mxu0 0.0
        %1338 = vmatprep.subr.mxu0 0.0
        %1339 = vmatpush1.xpose.msra.mxu0 0.0
        %1340 = vmatprep.subr.mxu0 0.0
        %1341 = vmatpush1.xpose.msra.mxu0 0.0
        %1342 = vmatprep.subr.mxu0 0.0
        %1343 = vmatpush1.xpose.msra.mxu0 0.0
        %1344 = vmatprep.subr.mxu0 0.0
        %1345 = vmatpush1.xpose.msra.mxu0 0.0
        %1346 = vmatprep.subr.mxu0 0.0
        %1347 = vmatpush1.xpose.msra.mxu0 0.0
        %1348 = vmatprep.subr.mxu0 0.0
        %1349 = vmatpush1.xpose.msra.mxu0 0.0
        %1350 = vmatprep.subr.mxu0 0.0
        %1351 = vmatpush1.xpose.msra.mxu0 0.0
        %1352 = vmatprep.subr.mxu0 0.0
        %1353 = vmatpush1.xpose.msra.mxu0 0.0
        %1354 = vmatprep.subr.mxu0 0.0
        %1355 = vmatpush1.xpose.msra.mxu0 0.0
        %1356 = vmatprep.subr.mxu0 0.0
        %1357 = vmatpush1.xpose.msra.mxu0 0.0
        %1358 = vmatprep.subr.mxu0 0.0
        %1359 = vmatpush1.xpose.msra.mxu0 0.0
        %1360 = vmatprep.subr.mxu0 0.0
        %1361 = vmatpush1.xpose.msra.mxu0 0.0
        %1362 = vmatprep.subr.mxu0 0.0
        %1363 = vmatpush1.xpose.msra.mxu0 0.0
        %1364 = vmatprep.subr.mxu0 0.0
        %1365 = vmatpush1.xpose.msra.mxu0 0.0
        %1366 = vmatprep.subr.mxu0 0.0
        %1367 = vmatpush1.xpose.msra.mxu0 0.0
        %1368 = vmatprep.mubr.f32.mxu0 0.0
        %1369 = vmatmul.mubr.f32.gmra.mrb[0].mxu0 %v1298
        %v1370 = vpop.f32.mrb[0].mxu0
        %v1371 = vadd.f32 %v944, %v1370
        %v1372 = vpop.f32.mrb[0].mxu0
        %1373 = vdwg.mxu0
        %v1374 = vsel %vm1026, %v1371, -inf
        %1375 = vmax.xlane.f32.xlu0 %v1374
        %v1376 = vpop.xlane.xlu0 %1375
        %v1377 = vsub.f32 %v1371, %v1376
        %v1378 = vmul.f32 %v1377, 1.442695
        %v1379 = vpow.pop %v1378
        %v1380 = vsel %vm1026, %v1379, 0.0
        %1381 = vadd.xlane.f32.xlu0 %v1380
        %v1382 = vpop.xlane.xlu0 %1381
        %v1383 = vrcp.pop %v1382
        %v1384 = vmul.f32 %v1379, %v1383
        %1385 = vrot.lane.b32.xlu0 %v938, 112
        %v1386 = vpop.permute.xlu0 %1385
        %1387 = vrot.lane.b32.xlu0 %v939, 112
        %v1388 = vpop.permute.xlu0 %1387
        %v1392 = vsel %vm1026, %v1384, 0
        %1394 = vmatprep.subr.mxu0 0.0
        %1395 = vmatpush1.msra.mxu0 %v1386
        %1396 = vmatprep.subr.mxu0 0.0
        %1397 = vmatpush1.msra.mxu0 %v1388
        %1398 = vmatprep.subr.mxu0 0.0
        %1399 = vmatpush1.msra.mxu0 0.0
        %1400 = vmatprep.subr.mxu0 0.0
        %1401 = vmatpush1.msra.mxu0 0.0
        %1402 = vmatprep.subr.mxu0 0.0
        %1403 = vmatpush1.msra.mxu0 0.0
        %1404 = vmatprep.subr.mxu0 0.0
        %1405 = vmatpush1.msra.mxu0 0.0
        %1406 = vmatprep.subr.mxu0 0.0
        %1407 = vmatpush1.msra.mxu0 0.0
        %1408 = vmatprep.subr.mxu0 0.0
        %1409 = vmatpush1.msra.mxu0 0.0
        %1410 = vmatprep.subr.mxu0 0.0
        %1411 = vmatpush1.msra.mxu0 0.0
        %1412 = vmatprep.subr.mxu0 0.0
        %1413 = vmatpush1.msra.mxu0 0.0
        %1414 = vmatprep.subr.mxu0 0.0
        %1415 = vmatpush1.msra.mxu0 0.0
        %1416 = vmatprep.subr.mxu0 0.0
        %1417 = vmatpush1.msra.mxu0 0.0
        %1418 = vmatprep.subr.mxu0 0.0
        %1419 = vmatpush1.msra.mxu0 0.0
        %1420 = vmatprep.subr.mxu0 0.0
        %1421 = vmatpush1.msra.mxu0 0.0
        %1422 = vmatprep.subr.mxu0 0.0
        %1423 = vmatpush1.msra.mxu0 0.0
        %1424 = vmatprep.subr.mxu0 0.0
        %1425 = vmatpush1.msra.mxu0 0.0
        %1426 = vmatprep.subr.mxu0 0.0
        %1427 = vmatpush1.msra.mxu0 0.0
        %1428 = vmatprep.subr.mxu0 0.0
        %1429 = vmatpush1.msra.mxu0 0.0
        %1430 = vmatprep.subr.mxu0 0.0
        %1431 = vmatpush1.msra.mxu0 0.0
        %1432 = vmatprep.subr.mxu0 0.0
        %1433 = vmatpush1.msra.mxu0 0.0
        %1434 = vmatprep.subr.mxu0 0.0
        %1435 = vmatpush1.msra.mxu0 0.0
        %1436 = vmatprep.subr.mxu0 0.0
        %1437 = vmatpush1.msra.mxu0 0.0
        %1438 = vmatprep.subr.mxu0 0.0
        %1439 = vmatpush1.msra.mxu0 0.0
        %1440 = vmatprep.subr.mxu0 0.0
        %1441 = vmatpush1.msra.mxu0 0.0
        %1442 = vmatprep.subr.mxu0 0.0
        %1443 = vmatpush1.msra.mxu0 0.0
        %1444 = vmatprep.subr.mxu0 0.0
        %1445 = vmatpush1.msra.mxu0 0.0
        %1446 = vmatprep.subr.mxu0 0.0
        %1447 = vmatpush1.msra.mxu0 0.0
        %1448 = vmatprep.subr.mxu0 0.0
        %1449 = vmatpush1.msra.mxu0 0.0
        %1450 = vmatprep.subr.mxu0 0.0
        %1451 = vmatpush1.msra.mxu0 0.0
        %1452 = vmatprep.subr.mxu0 0.0
        %1453 = vmatpush1.msra.mxu0 0.0
        %1454 = vmatprep.subr.mxu0 0.0
        %1455 = vmatpush1.msra.mxu0 0.0
        %1456 = vmatprep.subr.mxu0 0.0
        %1457 = vmatpush1.msra.mxu0 0.0
        %1458 = vmatprep.mubr.f32.mxu0 0.0
        %1459 = vmatmul.mubr.f32.gmra.mrb[0].mxu0 %v1392
        %v1460 = vpop.f32.mrb[0].mxu0
        %v1461 = vadd.f32 0.0, %v1460
        %v1462 = vpop.f32.mrb[0].mxu0
        %1463 = vdwg.mxu0
        %1465 = vrot.lane.b32.xlu0 %v1461, 16
        %v1466 = vpop.permute.xlu0 %1465
        %vm1468 = vcmask 195712
        %1469 = vst.msk [vmem:[#allocation4] sm:$0xff] %vm1468, %v1466
        %1470 = vrot.lane.b32.xlu0 %v932, 104
        %v1471 = vpop.permute.xlu0 %1470
        %1472 = vrot.lane.b32.xlu0 %v936, 104
        %v1473 = vpop.permute.xlu0 %1472
        %1474 = vrot.lane.b32.xlu0 %v937, 104
        %v1475 = vpop.permute.xlu0 %1474
        %v1476 = vsel %vm946, %v1471, 0
        %v1478 = vsel %vm946, %v1473, 0
        %v1480 = vsel %vm946, %v1475, 0
        %1482 = vmatprep.subr.mxu0 0.0
        %1483 = vmatpush1.xpose.msra.mxu0 %v1478
        %1484 = vmatprep.subr.mxu0 0.0
        %1485 = vmatpush1.xpose.msra.mxu0 %v1480
        %1486 = vmatprep.subr.mxu0 0.0
        %1487 = vmatpush1.xpose.msra.mxu0 0.0
        %1488 = vmatprep.subr.mxu0 0.0
        %1489 = vmatpush1.xpose.msra.mxu0 0.0
        %1490 = vmatprep.subr.mxu0 0.0
        %1491 = vmatpush1.xpose.msra.mxu0 0.0
        %1492 = vmatprep.subr.mxu0 0.0
        %1493 = vmatpush1.xpose.msra.mxu0 0.0
        %1494 = vmatprep.subr.mxu0 0.0
        %1495 = vmatpush1.xpose.msra.mxu0 0.0
        %1496 = vmatprep.subr.mxu0 0.0
        %1497 = vmatpush1.xpose.msra.mxu0 0.0
        %1498 = vmatprep.subr.mxu0 0.0
        %1499 = vmatpush1.xpose.msra.mxu0 0.0
        %1500 = vmatprep.subr.mxu0 0.0
        %1501 = vmatpush1.xpose.msra.mxu0 0.0
        %1502 = vmatprep.subr.mxu0 0.0
        %1503 = vmatpush1.xpose.msra.mxu0 0.0
        %1504 = vmatprep.subr.mxu0 0.0
        %1505 = vmatpush1.xpose.msra.mxu0 0.0
        %1506 = vmatprep.subr.mxu0 0.0
        %1507 = vmatpush1.xpose.msra.mxu0 0.0
        %1508 = vmatprep.subr.mxu0 0.0
        %1509 = vmatpush1.xpose.msra.mxu0 0.0
        %1510 = vmatprep.subr.mxu0 0.0
        %1511 = vmatpush1.xpose.msra.mxu0 0.0
        %1512 = vmatprep.subr.mxu0 0.0
        %1513 = vmatpush1.xpose.msra.mxu0 0.0
        %1514 = vmatprep.subr.mxu0 0.0
        %1515 = vmatpush1.xpose.msra.mxu0 0.0
        %1516 = vmatprep.subr.mxu0 0.0
        %1517 = vmatpush1.xpose.msra.mxu0 0.0
        %1518 = vmatprep.subr.mxu0 0.0
        %1519 = vmatpush1.xpose.msra.mxu0 0.0
        %1520 = vmatprep.subr.mxu0 0.0
        %1521 = vmatpush1.xpose.msra.mxu0 0.0
        %1522 = vmatprep.subr.mxu0 0.0
        %1523 = vmatpush1.xpose.msra.mxu0 0.0
        %1524 = vmatprep.subr.mxu0 0.0
        %1525 = vmatpush1.xpose.msra.mxu0 0.0
        %1526 = vmatprep.subr.mxu0 0.0
        %1527 = vmatpush1.xpose.msra.mxu0 0.0
        %1528 = vmatprep.subr.mxu0 0.0
        %1529 = vmatpush1.xpose.msra.mxu0 0.0
        %1530 = vmatprep.subr.mxu0 0.0
        %1531 = vmatpush1.xpose.msra.mxu0 0.0
        %1532 = vmatprep.subr.mxu0 0.0
        %1533 = vmatpush1.xpose.msra.mxu0 0.0
        %1534 = vmatprep.subr.mxu0 0.0
        %1535 = vmatpush1.xpose.msra.mxu0 0.0
        %1536 = vmatprep.subr.mxu0 0.0
        %1537 = vmatpush1.xpose.msra.mxu0 0.0
        %1538 = vmatprep.subr.mxu0 0.0
        %1539 = vmatpush1.xpose.msra.mxu0 0.0
        %1540 = vmatprep.subr.mxu0 0.0
        %1541 = vmatpush1.xpose.msra.mxu0 0.0
        %1542 = vmatprep.subr.mxu0 0.0
        %1543 = vmatpush1.xpose.msra.mxu0 0.0
        %1544 = vmatprep.subr.mxu0 0.0
        %1545 = vmatpush1.xpose.msra.mxu0 0.0
        %1546 = vmatprep.mubr.f32.mxu0 0.0
        %1547 = vmatmul.mubr.f32.gmra.mrb[0].mxu0 %v1476
        %v1548 = vpop.f32.mrb[0].mxu0
        %v1549 = vadd.f32 %v944, %v1548
        %v1550 = vpop.f32.mrb[0].mxu0
        %1551 = vdwg.mxu0
        %v1552 = vsel %vm1026, %v1549, -inf
        %1553 = vmax.xlane.f32.xlu0 %v1552
        %v1554 = vpop.xlane.xlu0 %1553
        %v1555 = vsub.f32 %v1549, %v1554
        %v1556 = vmul.f32 %v1555, 1.442695
        %v1557 = vpow.pop %v1556
        %v1558 = vsel %vm1026, %v1557, 0.0
        %1559 = vadd.xlane.f32.xlu0 %v1558
        %v1560 = vpop.xlane.xlu0 %1559
        %v1561 = vrcp.pop %v1560
        %v1562 = vmul.f32 %v1557, %v1561
        %1563 = vrot.lane.b32.xlu0 %v938, 104
        %v1564 = vpop.permute.xlu0 %1563
        %1565 = vrot.lane.b32.xlu0 %v939, 104
        %v1566 = vpop.permute.xlu0 %1565
        %v1570 = vsel %vm1026, %v1562, 0
        %1572 = vmatprep.subr.mxu0 0.0
        %1573 = vmatpush1.msra.mxu0 %v1564
        %1574 = vmatprep.subr.mxu0 0.0
        %1575 = vmatpush1.msra.mxu0 %v1566
        %1576 = vmatprep.subr.mxu0 0.0
        %1577 = vmatpush1.msra.mxu0 0.0
        %1578 = vmatprep.subr.mxu0 0.0
        %1579 = vmatpush1.msra.mxu0 0.0
        %1580 = vmatprep.subr.mxu0 0.0
        %1581 = vmatpush1.msra.mxu0 0.0
        %1582 = vmatprep.subr.mxu0 0.0
        %1583 = vmatpush1.msra.mxu0 0.0
        %1584 = vmatprep.subr.mxu0 0.0
        %1585 = vmatpush1.msra.mxu0 0.0
        %1586 = vmatprep.subr.mxu0 0.0
        %1587 = vmatpush1.msra.mxu0 0.0
        %1588 = vmatprep.subr.mxu0 0.0
        %1589 = vmatpush1.msra.mxu0 0.0
        %1590 = vmatprep.subr.mxu0 0.0
        %1591 = vmatpush1.msra.mxu0 0.0
        %1592 = vmatprep.subr.mxu0 0.0
        %1593 = vmatpush1.msra.mxu0 0.0
        %1594 = vmatprep.subr.mxu0 0.0
        %1595 = vmatpush1.msra.mxu0 0.0
        %1596 = vmatprep.subr.mxu0 0.0
        %1597 = vmatpush1.msra.mxu0 0.0
        %1598 = vmatprep.subr.mxu0 0.0
        %1599 = vmatpush1.msra.mxu0 0.0
        %1600 = vmatprep.subr.mxu0 0.0
        %1601 = vmatpush1.msra.mxu0 0.0
        %1602 = vmatprep.subr.mxu0 0.0
        %1603 = vmatpush1.msra.mxu0 0.0
        %1604 = vmatprep.subr.mxu0 0.0
        %1605 = vmatpush1.msra.mxu0 0.0
        %1606 = vmatprep.subr.mxu0 0.0
        %1607 = vmatpush1.msra.mxu0 0.0
        %1608 = vmatprep.subr.mxu0 0.0
        %1609 = vmatpush1.msra.mxu0 0.0
        %1610 = vmatprep.subr.mxu0 0.0
        %1611 = vmatpush1.msra.mxu0 0.0
        %1612 = vmatprep.subr.mxu0 0.0
        %1613 = vmatpush1.msra.mxu0 0.0
        %1614 = vmatprep.subr.mxu0 0.0
        %1615 = vmatpush1.msra.mxu0 0.0
        %1616 = vmatprep.subr.mxu0 0.0
        %1617 = vmatpush1.msra.mxu0 0.0
        %1618 = vmatprep.subr.mxu0 0.0
        %1619 = vmatpush1.msra.mxu0 0.0
        %1620 = vmatprep.subr.mxu0 0.0
        %1621 = vmatpush1.msra.mxu0 0.0
        %1622 = vmatprep.subr.mxu0 0.0
        %1623 = vmatpush1.msra.mxu0 0.0
        %1624 = vmatprep.subr.mxu0 0.0
        %1625 = vmatpush1.msra.mxu0 0.0
        %1626 = vmatprep.subr.mxu0 0.0
        %1627 = vmatpush1.msra.mxu0 0.0
        %1628 = vmatprep.subr.mxu0 0.0
        %1629 = vmatpush1.msra.mxu0 0.0
        %1630 = vmatprep.subr.mxu0 0.0
        %1631 = vmatpush1.msra.mxu0 0.0
        %1632 = vmatprep.subr.mxu0 0.0
        %1633 = vmatpush1.msra.mxu0 0.0
        %1634 = vmatprep.subr.mxu0 0.0
        %1635 = vmatpush1.msra.mxu0 0.0
        %1636 = vmatprep.mubr.f32.mxu0 0.0
        %1637 = vmatmul.mubr.f32.gmra.mrb[0].mxu0 %v1570
        %v1638 = vpop.f32.mrb[0].mxu0
        %v1639 = vadd.f32 0.0, %v1638
        %v1640 = vpop.f32.mrb[0].mxu0
        %1641 = vdwg.mxu0
        %1643 = vrot.lane.b32.xlu0 %v1639, 24
        %v1644 = vpop.permute.xlu0 %1643
        %vm1646 = vcmask 261312
        %1647 = vst.msk [vmem:[#allocation4] sm:$0xff] %vm1646, %v1644
        %v1648 = vld [vmem:[#allocation4] sm:$0xff]
        %v1649 = vld [vmem:[#allocation9] sm:$0xff]
        %v1650 = vld [vmem:[#allocation9 + $0x8] sm:$0xff]
        %v1651 = vld [vmem:[#allocation9 + $0x10] sm:$0xff]
        %v1652 = vld [vmem:[#allocation9 + $0x18] sm:$0xff]
        %v1653 = vld [vmem:[%s9] sm:$0x1]
        %v1655 = vlaneseq
        %v1656 = vshrl.u32 %v1655, 7
        %v1657 = vsub.s32 0, %v1656
        %v1658 = vrot.slane %v1653, %v1657
        %v1661 = vsel %vm822, %v1648, 0
        %1663 = vmatprep.subr.mxu0 0.0
        %1664 = vmatpush1.msra.mxu0 %v1649
        %1665 = vmatprep.subr.mxu0 0.0
        %1666 = vmatpush1.msra.mxu0 %v1650
        %1667 = vmatprep.subr.mxu0 0.0
        %1668 = vmatpush1.msra.mxu0 %v1651
        %1669 = vmatprep.subr.mxu0 0.0
        %1670 = vmatpush1.msra.mxu0 %v1652
        %1671 = vmatprep.subr.mxu0 0.0
        %1672 = vmatpush1.msra.mxu0 0.0
        %1673 = vmatprep.subr.mxu0 0.0
        %1674 = vmatpush1.msra.mxu0 0.0
        %1675 = vmatprep.subr.mxu0 0.0
        %1676 = vmatpush1.msra.mxu0 0.0
        %1677 = vmatprep.subr.mxu0 0.0
        %1678 = vmatpush1.msra.mxu0 0.0
        %1679 = vmatprep.subr.mxu0 0.0
        %1680 = vmatpush1.msra.mxu0 0.0
        %1681 = vmatprep.subr.mxu0 0.0
        %1682 = vmatpush1.msra.mxu0 0.0
        %1683 = vmatprep.subr.mxu0 0.0
        %1684 = vmatpush1.msra.mxu0 0.0
        %1685 = vmatprep.subr.mxu0 0.0
        %1686 = vmatpush1.msra.mxu0 0.0
        %1687 = vmatprep.subr.mxu0 0.0
        %1688 = vmatpush1.msra.mxu0 0.0
        %1689 = vmatprep.subr.mxu0 0.0
        %1690 = vmatpush1.msra.mxu0 0.0
        %1691 = vmatprep.subr.mxu0 0.0
        %1692 = vmatpush1.msra.mxu0 0.0
        %1693 = vmatprep.subr.mxu0 0.0
        %1694 = vmatpush1.msra.mxu0 0.0
        %1695 = vmatprep.subr.mxu0 0.0
        %1696 = vmatpush1.msra.mxu0 0.0
        %1697 = vmatprep.subr.mxu0 0.0
        %1698 = vmatpush1.msra.mxu0 0.0
        %1699 = vmatprep.subr.mxu0 0.0
        %1700 = vmatpush1.msra.mxu0 0.0
        %1701 = vmatprep.subr.mxu0 0.0
        %1702 = vmatpush1.msra.mxu0 0.0
        %1703 = vmatprep.subr.mxu0 0.0
        %1704 = vmatpush1.msra.mxu0 0.0
        %1705 = vmatprep.subr.mxu0 0.0
        %1706 = vmatpush1.msra.mxu0 0.0
        %1707 = vmatprep.subr.mxu0 0.0
        %1708 = vmatpush1.msra.mxu0 0.0
        %1709 = vmatprep.subr.mxu0 0.0
        %1710 = vmatpush1.msra.mxu0 0.0
        %1711 = vmatprep.subr.mxu0 0.0
        %1712 = vmatpush1.msra.mxu0 0.0
        %1713 = vmatprep.subr.mxu0 0.0
        %1714 = vmatpush1.msra.mxu0 0.0
        %1715 = vmatprep.subr.mxu0 0.0
        %1716 = vmatpush1.msra.mxu0 0.0
        %1717 = vmatprep.subr.mxu0 0.0
        %1718 = vmatpush1.msra.mxu0 0.0
        %1719 = vmatprep.subr.mxu0 0.0
        %1720 = vmatpush1.msra.mxu0 0.0
        %1721 = vmatprep.subr.mxu0 0.0
        %1722 = vmatpush1.msra.mxu0 0.0
        %1723 = vmatprep.subr.mxu0 0.0
        %1724 = vmatpush1.msra.mxu0 0.0
        %1725 = vmatprep.subr.mxu0 0.0
        %1726 = vmatpush1.msra.mxu0 0.0
        %1727 = vmatprep.mubr.f32.mxu0 0.0
        %1728 = vmatmul.mubr.f32.gmra.mrb[0].mxu0 %v1661
        %v1729 = vpop.f32.mrb[0].mxu0
        %v1730 = vadd.f32 %v1658, %v1729
        %v1731 = vpop.f32.mrb[0].mxu0
        %1732 = vdwg.mxu0
        %v1733 = vadd.f32 %v821, %v1730
        %v1734 = vsel %vm822, %v1733, 0.0
        %1735 = vadd.xlane.f32.xlu0 %v1734
        %v1736 = vpop.xlane.xlu0 %1735
        %v1737 = vmul.f32 %v1736, %v826
        %v1738 = vsub.f32 %v1733, %v1737
        %v1739 = vmul.f32 %v1738, %v1738
        %v1740 = vsel %vm822, %v1739, 0.0
        %1741 = vadd.xlane.f32.xlu0 %v1740
        %v1742 = vpop.xlane.xlu0 %1741
        %v1743 = vmul.f32 %v1742, 0.032258064
        %v1744 = vrsqrt.pop %v1743
        %v1745 = vmul.f32 %v1743, %v1744
        %vm1746 = vcmp.eq.f32.partialorder %v1743, inf
        %v1747 = vsel %vm1746, %v1743, %v1745
        %vm1748 = vcmp.eq.f32.partialorder %v1743, 0.0
        %v1749 = vand.u32 %v1743, 2147483648
        %v1750 = vsel %vm1748, %v1749, %v1747
        %v1751 = vadd.f32 %v1750, 1e-06
        %v1752 = vrcp.pop %v1751
        %v1753 = vstv %s581
        %v1754 = vmul.f32 %v1753, %v1738
        %v1755 = vmul.f32 %v1754, %v1752
        %v1756 = vstv %s582
        %v1757 = vadd.f32 %v1755, %v1756
        %v1758 = vld [vmem:[#allocation11] sm:$0xff]
        %v1759 = vld [vmem:[#allocation11 + $0x8] sm:$0xff]
        %v1760 = vld [vmem:[#allocation11 + $0x10] sm:$0xff]
        %v1761 = vld [vmem:[#allocation11 + $0x18] sm:$0xff]
        %v1762 = vld [vmem:[%s11] sm:$0x1]
        %v1764 = vlaneseq
        %v1765 = vshrl.u32 %v1764, 7
        %v1766 = vsub.s32 0, %v1765
        %v1767 = vrot.slane %v1762, %v1766
        %v1770 = vsel %vm822, %v1757, 0
        %1772 = vmatprep.subr.mxu0 0.0
        %1773 = vmatpush1.msra.mxu0 %v1758
        %1774 = vmatprep.subr.mxu0 0.0
        %1775 = vmatpush1.msra.mxu0 %v1759
        %1776 = vmatprep.subr.mxu0 0.0
        %1777 = vmatpush1.msra.mxu0 %v1760
        %1778 = vmatprep.subr.mxu0 0.0
        %1779 = vmatpush1.msra.mxu0 %v1761
        %1780 = vmatprep.subr.mxu0 0.0
        %1781 = vmatpush1.msra.mxu0 0.0
        %1782 = vmatprep.subr.mxu0 0.0
        %1783 = vmatpush1.msra.mxu0 0.0
        %1784 = vmatprep.subr.mxu0 0.0
        %1785 = vmatpush1.msra.mxu0 0.0
        %1786 = vmatprep.subr.mxu0 0.0
        %1787 = vmatpush1.msra.mxu0 0.0
        %1788 = vmatprep.subr.mxu0 0.0
        %1789 = vmatpush1.msra.mxu0 0.0
        %1790 = vmatprep.subr.mxu0 0.0
        %1791 = vmatpush1.msra.mxu0 0.0
        %1792 = vmatprep.subr.mxu0 0.0
        %1793 = vmatpush1.msra.mxu0 0.0
        %1794 = vmatprep.subr.mxu0 0.0
        %1795 = vmatpush1.msra.mxu0 0.0
        %1796 = vmatprep.subr.mxu0 0.0
        %1797 = vmatpush1.msra.mxu0 0.0
        %1798 = vmatprep.subr.mxu0 0.0
        %1799 = vmatpush1.msra.mxu0 0.0
        %1800 = vmatprep.subr.mxu0 0.0
        %1801 = vmatpush1.msra.mxu0 0.0
        %1802 = vmatprep.subr.mxu0 0.0
        %1803 = vmatpush1.msra.mxu0 0.0
        %1804 = vmatprep.subr.mxu0 0.0
        %1805 = vmatpush1.msra.mxu0 0.0
        %1806 = vmatprep.subr.mxu0 0.0
        %1807 = vmatpush1.msra.mxu0 0.0
        %1808 = vmatprep.subr.mxu0 0.0
        %1809 = vmatpush1.msra.mxu0 0.0
        %1810 = vmatprep.subr.mxu0 0.0
        %1811 = vmatpush1.msra.mxu0 0.0
        %1812 = vmatprep.subr.mxu0 0.0
        %1813 = vmatpush1.msra.mxu0 0.0
        %1814 = vmatprep.subr.mxu0 0.0
        %1815 = vmatpush1.msra.mxu0 0.0
        %1816 = vmatprep.subr.mxu0 0.0
        %1817 = vmatpush1.msra.mxu0 0.0
        %1818 = vmatprep.subr.mxu0 0.0
        %1819 = vmatpush1.msra.mxu0 0.0
        %1820 = vmatprep.subr.mxu0 0.0
        %1821 = vmatpush1.msra.mxu0 0.0
        %1822 = vmatprep.subr.mxu0 0.0
        %1823 = vmatpush1.msra.mxu0 0.0
        %1824 = vmatprep.subr.mxu0 0.0
        %1825 = vmatpush1.msra.mxu0 0.0
        %1826 = vmatprep.subr.mxu0 0.0
        %1827 = vmatpush1.msra.mxu0 0.0
        %1828 = vmatprep.subr.mxu0 0.0
        %1829 = vmatpush1.msra.mxu0 0.0
        %1830 = vmatprep.subr.mxu0 0.0
        %1831 = vmatpush1.msra.mxu0 0.0
        %1832 = vmatprep.subr.mxu0 0.0
        %1833 = vmatpush1.msra.mxu0 0.0
        %1834 = vmatprep.subr.mxu0 0.0
        %1835 = vmatpush1.msra.mxu0 0.0
        %1836 = vmatprep.mubr.f32.mxu0 0.0
        %1837 = vmatmul.mubr.f32.gmra.mrb[0].mxu0 %v1770
        %v1838 = vpop.f32.mrb[0].mxu0
        %v1839 = vadd.f32 %v1767, %v1838
        %v1840 = vpop.f32.mrb[0].mxu0
        %1841 = vdwg.mxu0
        %v1842 = vmax.f32 %v1839, 0.0
        %v1843 = vld [vmem:[%s12] sm:$0xff]
        %v1844 = vld [vmem:[%s12 + $0x8] sm:$0xff]
        %v1845 = vld [vmem:[%s12 + $0x10] sm:$0xff]
        %v1846 = vld [vmem:[%s12 + $0x18] sm:$0xff]
        %v1847 = vld [vmem:[%s12 + $0x20] sm:$0xff]
        %v1848 = vld [vmem:[%s12 + $0x28] sm:$0xff]
        %v1849 = vld [vmem:[%s12 + $0x30] sm:$0xff]
        %v1850 = vld [vmem:[%s12 + $0x38] sm:$0xff]
        %v1851 = vld [vmem:[%s13] sm:$0x1]
        %v1853 = vlaneseq
        %v1854 = vshrl.u32 %v1853, 7
        %v1855 = vsub.s32 0, %v1854
        %v1856 = vrot.slane %v1851, %v1855
        %vm1858 = vcmask 523264
        %v1860 = vsel %vm1858, %v1842, 0
        %1862 = vmatprep.subr.mxu0 0.0
        %1863 = vmatpush1.msra.mxu0 %v1843
        %1864 = vmatprep.subr.mxu0 0.0
        %1865 = vmatpush1.msra.mxu0 %v1844
        %1866 = vmatprep.subr.mxu0 0.0
        %1867 = vmatpush1.msra.mxu0 %v1845
        %1868 = vmatprep.subr.mxu0 0.0
        %1869 = vmatpush1.msra.mxu0 %v1846
        %1870 = vmatprep.subr.mxu0 0.0
        %1871 = vmatpush1.msra.mxu0 %v1847
        %1872 = vmatprep.subr.mxu0 0.0
        %1873 = vmatpush1.msra.mxu0 %v1848
        %1874 = vmatprep.subr.mxu0 0.0
        %1875 = vmatpush1.msra.mxu0 %v1849
        %1876 = vmatprep.subr.mxu0 0.0
        %1877 = vmatpush1.msra.mxu0 %v1850
        %1878 = vmatprep.subr.mxu0 0.0
        %1879 = vmatpush1.msra.mxu0 0.0
        %1880 = vmatprep.subr.mxu0 0.0
        %1881 = vmatpush1.msra.mxu0 0.0
        %1882 = vmatprep.subr.mxu0 0.0
        %1883 = vmatpush1.msra.mxu0 0.0
        %1884 = vmatprep.subr.mxu0 0.0
        %1885 = vmatpush1.msra.mxu0 0.0
        %1886 = vmatprep.subr.mxu0 0.0
        %1887 = vmatpush1.msra.mxu0 0.0
        %1888 = vmatprep.subr.mxu0 0.0
        %1889 = vmatpush1.msra.mxu0 0.0
        %1890 = vmatprep.subr.mxu0 0.0
        %1891 = vmatpush1.msra.mxu0 0.0
        %1892 = vmatprep.subr.mxu0 0.0
        %1893 = vmatpush1.msra.mxu0 0.0
        %1894 = vmatprep.subr.mxu0 0.0
        %1895 = vmatpush1.msra.mxu0 0.0
        %1896 = vmatprep.subr.mxu0 0.0
        %1897 = vmatpush1.msra.mxu0 0.0
        %1898 = vmatprep.subr.mxu0 0.0
        %1899 = vmatpush1.msra.mxu0 0.0
        %1900 = vmatprep.subr.mxu0 0.0
        %1901 = vmatpush1.msra.mxu0 0.0
        %1902 = vmatprep.subr.mxu0 0.0
        %1903 = vmatpush1.msra.mxu0 0.0
        %1904 = vmatprep.subr.mxu0 0.0
        %1905 = vmatpush1.msra.mxu0 0.0
        %1906 = vmatprep.subr.mxu0 0.0
        %1907 = vmatpush1.msra.mxu0 0.0
        %1908 = vmatprep.subr.mxu0 0.0
        %1909 = vmatpush1.msra.mxu0 0.0
        %1910 = vmatprep.subr.mxu0 0.0
        %1911 = vmatpush1.msra.mxu0 0.0
        %1912 = vmatprep.subr.mxu0 0.0
        %1913 = vmatpush1.msra.mxu0 0.0
        %1914 = vmatprep.subr.mxu0 0.0
        %1915 = vmatpush1.msra.mxu0 0.0
        %1916 = vmatprep.subr.mxu0 0.0
        %1917 = vmatpush1.msra.mxu0 0.0
        %1918 = vmatprep.subr.mxu0 0.0
        %1919 = vmatpush1.msra.mxu0 0.0
        %1920 = vmatprep.subr.mxu0 0.0
        %1921 = vmatpush1.msra.mxu0 0.0
        %1922 = vmatprep.subr.mxu0 0.0
        %1923 = vmatpush1.msra.mxu0 0.0
        %1924 = vmatprep.subr.mxu0 0.0
        %1925 = vmatpush1.msra.mxu0 0.0
        %1926 = vmatprep.mubr.f32.mxu0 0.0
        %1927 = vmatmul.mubr.f32.gmra.mrb[0].mxu0 %v1860
        %v1928 = vpop.f32.mrb[0].mxu0
        %v1929 = vadd.f32 %v1856, %v1928
        %v1930 = vpop.f32.mrb[0].mxu0
        %1931 = vdwg.mxu0
        %v1932 = vadd.f32 %v1733, %v1929
        %1933 = vst.msk [vmem:[%s570] sm:$0xff] %vm822, %v1932
        %s1934 = sand.u32 %s379, 1
        %s1935 = scalar_lea.sflag [#allocation7], %s1934
        %s1936 = sand.u32 %s379, 1
        %s1937 = smul.addr %s1936, 8
        %s1938 = scalar_lea.vmem [#allocation13], %s1937
        // Predicated region
        $region101: #{tpu_custom_call.1} parent=79 // pred_check
          %p1939 = pneg %p389
        $region102: #{tpu_custom_call.1} parent=79 // pred_check_branch
          %1941 = sbr.rel (%p1939) target = $region104
        $region103: #{tpu_custom_call.1} parent=79 // pred_region
          %s1943 = ssub.s32 128, 128
          %1944 = vsyncadd %s1935, %s1943
          %s1945 = smul.addr %s36, 2
          %s1946 = sadd.s32 %s37, %s1945
          %s1947 = smul.addr %s1946, 128
          %s1948 = scalar_lea.hbm %s15, %s1947
          %s1950 = sshll.u32 %s1938, 4
          %s1951 = int_to_ptr.vmem [resolvable:$true] %s1950
          %1953 = dma.vmem_to_hbm [thread:$0]  %s1951, 128, %s1948, %s1935
        $region104: #{tpu_custom_call.1} parent=79 // pred_fallthru
          _
      $region80: #{tpu_custom_call.1} parent=5 // pred_fallthru
        _
      %p1954 = scmp.le.s32.totalorder 2, %s27
      // Predicated region
      $region105: #{tpu_custom_call.1} parent=5 // pred_check
        %p1955 = pneg %p1954
      $region106: #{tpu_custom_call.1} parent=5 // pred_check_branch
        %1957 = sbr.rel (%p1955) target = $region108
      $region107: #{tpu_custom_call.1} parent=5 // pred_region
        %s1958 = ssub.s32 %s27, 2
        // Predicated region
        $region109: #{tpu_custom_call.1} parent=107 // pred_check
          %p1959 = pneg %p395
        $region110: #{tpu_custom_call.1} parent=107 // pred_check_branch
          %1961 = sbr.rel (%p1959) target = $region112
        $region111: #{tpu_custom_call.1} parent=107 // pred_region
          %s1962 = sand.u32 %s380, 1
          %s1963 = scalar_lea.sflag [#allocation7], %s1962
          %s1964 = sand.u32 %s380, 1
          %s1965 = smul.addr %s1964, 8
          %s1966 = scalar_lea.vmem [#allocation13], %s1965
          %1967 = dma.done %s1963, 128
        $region112: #{tpu_custom_call.1} parent=107 // pred_fallthru
          _
      $region108: #{tpu_custom_call.1} parent=5 // pred_fallthru
        _
    $region6: #{tpu_custom_call.1} parent=1 // loop_footer
      %s31 = sadd.s32 1, %s27
    $region7: #{tpu_custom_call.1} parent=1 // loop_footer_branch
      %26 = sbr.rel target = $region3
    $region8: #{tpu_custom_call.1} parent=1 // loop_exit
      _
    %1968 = vsyncpa [#allocation6], 1
    %s1969 = scalar_lea.sflag [#allocation6], 1
    %1970 = vsyncpa %s1969, 1
    %1971 = vsyncpa [#allocation10], 1
    %1972 = vsyncpa [#allocation7], 1
    %s1973 = scalar_lea.sflag [#allocation7], 1
    %1974 = vsyncpa %s1973, 1
    %1975 = vsyncpa [#allocation8], 1
    %s1976 = scalar_lea.sflag [#allocation8], 1
    %1977 = vsyncpa %s1976, 1

</llo_original>
